<compile_context>
chip_gen: v7x
topology: tpu7x:2x2x1
jax: 0.10.0
libtpu: 0.0.40
codegen_flags: <defaults>
</compile_context>

<pallas_src>
import functools

import jax
import jax.numpy as jnp
from jax.experimental import pallas as pl
from jax.experimental.pallas import tpu as pltpu


LANE = 128


def _round_up(n, m):
    return ((n + m - 1) // m) * m


def _cdiv(a, b):
    return (a + b - 1) // b


# ---------------------------------------------------------------------------
# Resident (constant-block-index) spec factory: single-buffer when supported.
# ---------------------------------------------------------------------------
def _make_resident_factory():
    try:
        mode = pl.Buffered(1)
        # Probe construction once; if the kwarg is unsupported we fall back.
        pl.BlockSpec((8, LANE), lambda i: (0, 0), pipeline_mode=mode)

        def factory(shape):
            return pl.BlockSpec(shape,
                                lambda i, _n=len(shape): (0,) * _n,
                                pipeline_mode=mode)
        return factory, 1
    except (AttributeError, TypeError):
        def factory(shape):
            return pl.BlockSpec(shape, lambda i, _n=len(shape): (0,) * _n)
        return factory, 2


_RESIDENT_SPEC, _WEIGHT_BUFFERS = _make_resident_factory()


def _vmem_cap_bytes():
    """Generation-aware usable-VMEM cap (~7/8 of physical)."""
    try:
        info = pltpu.get_tpu_info()
        cap = getattr(info, "vmem_capacity_bytes", None)
        if cap:
            return int(cap) * 7 // 8   # ~112 MiB on v5e/v6e, ~56 MiB on v7x
    except Exception:
        pass
    return 56 << 20                    # conservative (v7x-safe) fallback


# ---------------------------------------------------------------------------
# Kernel
# ---------------------------------------------------------------------------
def _aggregate_net_kernel(num_blocks,
                          x1_ref,     # [TB, D1p]        (compute dtype)
                          x2_ref,     # [TB, D2p]        (compute dtype)
                          w1_ref,     # [D1p+D2p, Hp]    (compute dtype)
                          b1_ref,     # [1, Hp]          (f32)
                          wb1_ref,    # [N, Hp, Hp]
                          bb1_ref,    # [N, 1, Hp]       (f32)
                          wb2_ref,    # [N, Hp, Hp]
                          bb2_ref,    # [N, 1, Hp]       (f32)
                          wf_ref,     # [Hp, Doutp]
                          bf_ref,     # [1, Doutp]       (f32)
                          out_ref):   # [TB, Doutp]      (f32)
    cd = w1_ref.dtype  # MXU compute dtype (bf16); accumulation stays f32

    # Fused "concat -> Linear + ReLU" as a single full-depth MXU matmul:
    # cat(x1, x2) @ W1, with the concat done on VMEM tiles (no HBM trip).
    x = jnp.concatenate([x1_ref[...], x2_ref[...]], axis=1)
    h = jnp.dot(x, w1_ref[...], preferred_element_type=jnp.float32) + b1_ref[...]
    h = jnp.maximum(h, 0.0)
    # TODO(synk): nn.Dropout is identity in eval mode; training-mode dropout not implemented.

    def residual_block(i, h):
        identity = h
        o = jnp.dot(h.astype(cd), wb1_ref[i],
                    preferred_element_type=jnp.float32) + bb1_ref[i]
        o = jnp.maximum(o, 0.0)
        o = jnp.dot(o.astype(cd), wb2_ref[i],
                    preferred_element_type=jnp.float32) + bb2_ref[i]
        o = o + identity
        return jnp.maximum(o, 0.0)

    if num_blocks <= 8:
        # Small/medium fixed N: full static unroll (best LLO visibility).
        for i in range(num_blocks):
            h = residual_block(i, h)
    else:
        # Large N: modest unroll=2 lets the VPU epilogue of block i overlap
        # the MXU push of block i+1 while bounding vreg live ranges.
        h = jax.lax.fori_loop(0, num_blocks, residual_block, h, unroll=2)

    # Output projection + final ReLU.
    out = jnp.dot(h.astype(cd), wf_ref[...],
                  preferred_element_type=jnp.float32) + bf_ref[...]
    out = jnp.maximum(out, 0.0)
    out_ref[...] = out.astype(out_ref.dtype)


# ---------------------------------------------------------------------------
# Parameter packing (single padded first-layer weight, pad to lane multiples,
# cast weights to bf16; biases stay f32)
# ---------------------------------------------------------------------------
def pack_params(params, d1, compute_dtype=jnp.bfloat16):
    """params: raw f32 (w1, b1, wb1, bb1, wb2, bb2, wf, bf) with
    w1: [D1+D2, H], b1: [1, H], wb*: [N, H, H], bb*: [N, 1, H],
    wf: [H, D_out], bf: [1, D_out]."""
    w1, b1, wb1, bb1, wb2, bb2, wf, bf = params
    d_in, h = w1.shape
    d2 = d_in - d1
    n = wb1.shape[0]
    d_out = wf.shape[1]

    d1p, d2p = _round_up(d1, LANE), _round_up(d2, LANE)
    hp, d_outp = _round_up(h, LANE), _round_up(d_out, LANE)

    def pad2(a, r, c):
        return jnp.pad(a, ((0, r - a.shape[0]), (0, c - a.shape[1])))

    # First-layer weight packed so that rows line up with in-kernel
    # concat([x1 padded to D1p, x2 padded to D2p]).
    w1a = pad2(w1[:d1], d1p, hp)
    w1b = pad2(w1[d1:], d2p, hp)
    w1p = jnp.concatenate([w1a, w1b], axis=0).astype(compute_dtype)  # [D1p+D2p, Hp]
    b1p = pad2(b1, 1, hp).astype(jnp.float32)

    wb1p = jnp.pad(wb1, ((0, 0), (0, hp - h), (0, hp - h))).astype(compute_dtype)
    wb2p = jnp.pad(wb2, ((0, 0), (0, hp - h), (0, hp - h))).astype(compute_dtype)
    bb1p = jnp.pad(bb1, ((0, 0), (0, 0), (0, hp - h))).astype(jnp.float32)
    bb2p = jnp.pad(bb2, ((0, 0), (0, 0), (0, hp - h))).astype(jnp.float32)

    wfp = pad2(wf, hp, d_outp).astype(compute_dtype)
    bfp = pad2(bf, 1, d_outp).astype(jnp.float32)

    packed = (w1p, b1p, wb1p, bb1p, wb2p, bb2p, wfp, bfp)
    dims = dict(d1=d1, d2=d2, d1p=d1p, d2p=d2p, hp=hp,
                d_out=d_out, d_outp=d_outp, n=n)
    return packed, dims


# ---------------------------------------------------------------------------
# Forward wrapper
# ---------------------------------------------------------------------------
def aggregate_net_forward(x1, x2, packed_params, dims):
    w1, b1, wb1, bb1, wb2, bb2, wf, bf = packed_params
    cd = w1.dtype
    cd_bytes = jnp.dtype(cd).itemsize
    b = x1.shape[0]
    d1, d2 = dims["d1"], dims["d2"]
    d1p, d2p = dims["d1p"], dims["d2p"]
    hp, d_out, d_outp, n = dims["hp"], dims["d_out"], dims["d_outp"], dims["n"]

    def nbytes(a):
        return a.size * a.dtype.itemsize

    weight_bytes = sum(nbytes(a) for a in packed_params)
    vmem_cap = _vmem_cap_bytes()

    def footprint(tb):
        io = 2 * tb * ((d1p + d2p) * cd_bytes + d_outp * 4)  # double-buffered I/O
        act = 4 * tb * hp * 4                                # live f32 intermediates
        return _WEIGHT_BUFFERS * weight_bytes + io + act

    # --- tile selection -----------------------------------------------------
    if b <= 256:
        # Even >=2-step grid so the batch axis shards across both v7x cores.
        tile_b = max(16, _round_up(_cdiv(b, 2), 16))
        steps = max(2, _cdiv(b, tile_b))
    else:
        tile_b = 16
        for cand in (512, 256, 128, 64, 32, 16):
            if footprint(cand) + (4 << 20) <= vmem_cap:
                tile_b = cand
                break
        steps = _cdiv(b, tile_b)
    bp = steps * tile_b
    grid = (steps,)

    # --- VMEM budget (explicit fits check instead of silent clamping) -------
    need = footprint(tile_b)
    if need + (2 << 20) > vmem_cap:
        # TODO(synk): stream residual-block weights (grid axis / emit_pipeline
        # over blocks with an h-carry scratch) instead of keeping all N resident.
        raise ValueError(
            f"AggregateNet weights ({weight_bytes >> 20} MiB) + tiles do not fit "
            f"the {vmem_cap >> 20} MiB VMEM budget on this chip; reduce "
            f"hidden_dim/num_residual_blocks or add weight streaming.")
    vmem_limit = int(min(max(need + (8 << 20), 16 << 20), vmem_cap))

    # --- pad + cast activations ---------------------------------------------
    # Padded rows/cols contribute exactly 0 through the matmuls; bf16 halves
    # input HBM traffic.
    x1p = jnp.pad(x1, ((0, bp - b), (0, d1p - d1))).astype(cd)
    x2p = jnp.pad(x2, ((0, bp - b), (0, d2p - d2))).astype(cd)

    in_specs = [
        pl.BlockSpec((tile_b, d1p), lambda i: (i, 0)),
        pl.BlockSpec((tile_b, d2p), lambda i: (i, 0)),
        _RESIDENT_SPEC(w1.shape), _RESIDENT_SPEC(b1.shape),
        _RESIDENT_SPEC(wb1.shape), _RESIDENT_SPEC(bb1.shape),
        _RESIDENT_SPEC(wb2.shape), _RESIDENT_SPEC(bb2.shape),
        _RESIDENT_SPEC(wf.shape), _RESIDENT_SPEC(bf.shape),
    ]
    out_spec = pl.BlockSpec((tile_b, d_outp), lambda i: (i, 0))

    flops = 2 * bp * ((d1p + d2p) * hp + 2 * n * hp * hp + hp * d_outp)
    bytes_accessed = nbytes(x1p) + nbytes(x2p) + weight_bytes + bp * d_outp * 4
    cost = pl.CostEstimate(flops=flops, transcendentals=0,
                           bytes_accessed=bytes_accessed)

    kernel = functools.partial(_aggregate_net_kernel, n)

    out = pl.pallas_call(
        kernel,
        out_shape=jax.ShapeDtypeStruct((bp, d_outp), jnp.float32),
        grid=grid,
        in_specs=in_specs,
        out_specs=out_spec,
        compiler_params=pltpu.CompilerParams(
            dimension_semantics=("parallel",),   # megacore sharding on v7x
            vmem_limit_bytes=vmem_limit),
        cost_estimate=cost,
    )(x1p, x2p, w1, b1, wb1, bb1, wb2, bb2, wf, bf)

    return out[:b, :d_out]


# ---------------------------------------------------------------------------
# PyTorch-style parameter init (raw, unpadded, f32)
# ---------------------------------------------------------------------------
def init_params(key, input_dim, output_dim, num_residual_blocks, hidden_dim):
    def linear(key, fan_in, fan_out):
        kw, kb = jax.random.split(key)
        bound = 1.0 / jnp.sqrt(fan_in)
        w = jax.random.uniform(kw, (fan_in, fan_out), jnp.float32, -bound, bound)
        b = jax.random.uniform(kb, (1, fan_out), jnp.float32, -bound, bound)
        return w, b

    keys = jax.random.split(key, 2 + 2 * num_residual_blocks)
    w1, b1 = linear(keys[0], input_dim, hidden_dim)

    wb1_l, bb1_l, wb2_l, bb2_l = [], [], [], []
    for i in range(num_residual_blocks):
        w_a, b_a = linear(keys[1 + 2 * i], hidden_dim, hidden_dim)
        w_b, b_b = linear(keys[2 + 2 * i], hidden_dim, hidden_dim)
        wb1_l.append(w_a); bb1_l.append(b_a)
        wb2_l.append(w_b); bb2_l.append(b_b)
    wb1 = jnp.stack(wb1_l)                          # [N, H, H]
    bb1 = jnp.stack(bb1_l)                          # [N, 1, H]
    wb2 = jnp.stack(wb2_l)
    bb2 = jnp.stack(bb2_l)

    wf, bf = linear(keys[-1], hidden_dim, output_dim)
    return (w1, b1, wb1, bb1, wb2, bb2, wf, bf)


# ---------------------------------------------------------------------------
# Self-test
# ---------------------------------------------------------------------------
if __name__ == "__main__":
    B, D1, D2 = 8, 8, 8
    input_dim = D1 + D2
    hidden_dim = 32
    output_dim = 4
    num_residual_blocks = 2

    key = jax.random.PRNGKey(0)
    kx1, kx2, kp = jax.random.split(key, 3)
    x1 = jax.random.normal(kx1, (B, D1), jnp.float32)
    x2 = jax.random.normal(kx2, (B, D2), jnp.float32)

    raw_params = init_params(kp, input_dim, output_dim,
                             num_residual_blocks, hidden_dim)
    packed, dims = pack_params(raw_params, D1, compute_dtype=jnp.bfloat16)

    out = aggregate_net_forward(x1, x2, packed, dims)
    jax.block_until_ready(out)
    assert out.shape == (B, output_dim)

    # Reference 1: same padded/bf16 math in plain JAX (tight tolerance).
    def ref_packed(x1, x2, packed, dims):
        w1, b1, wb1, bb1, wb2, bb2, wf, bf = packed
        cd = w1.dtype
        x1p = jnp.pad(x1, ((0, 0), (0, dims["d1p"] - dims["d1"]))).astype(cd)
        x2p = jnp.pad(x2, ((0, 0), (0, dims["d2p"] - dims["d2"]))).astype(cd)
        x = jnp.concatenate([x1p, x2p], axis=1)
        h = jnp.dot(x, w1, preferred_element_type=jnp.float32) + b1
        h = jnp.maximum(h, 0.0)
        for i in range(dims["n"]):
            ident = h
            o = jnp.maximum(
                jnp.dot(h.astype(cd), wb1[i],
                        preferred_element_type=jnp.float32) + bb1[i], 0.0)
            o = jnp.dot(o.astype(cd), wb2[i],
                        preferred_element_type=jnp.float32) + bb2[i] + ident
            h = jnp.maximum(o, 0.0)
        out = jnp.maximum(
            jnp.dot(h.astype(cd), wf,
                    preferred_element_type=jnp.float32) + bf, 0.0)
        return out[:, :dims["d_out"]]

    ref_bf16 = ref_packed(x1, x2, packed, dims)
    assert jnp.allclose(out, ref_bf16, atol=2e-3, rtol=2e-3), \
        "mismatch vs packed bf16 reference"

    # Reference 2: original full-f32 math (loose tolerance; checks packing).
    def ref_f32(x1, x2, params):
        w1, b1, wb1, bb1, wb2, bb2, wf, bf = params
        x = jnp.concatenate([x1, x2], axis=1)
        h = jnp.maximum(x @ w1 + b1, 0.0)
        for i in range(wb1.shape[0]):
            ident = h
            o = jnp.maximum(h @ wb1[i] + bb1[i], 0.0)
            o = o @ wb2[i] + bb2[i] + ident
            h = jnp.maximum(o, 0.0)
        return jnp.maximum(h @ wf + bf, 0.0)

    ref32 = ref_f32(x1, x2, raw_params)
    assert jnp.allclose(out, ref32, atol=5e-2, rtol=5e-2), \
        "mismatch vs f32 reference"

    print("KERNEL_OK")
</pallas_src>

<mosaic_0001>
module attributes {stable_mosaic.version = 11 : i64} {
  func.func @_aggregate_net_kernel(%arg0: i32, %arg1: memref<16x128xbf16, #tpu.memory_space<vmem>>, %arg2: memref<16x128xbf16, #tpu.memory_space<vmem>>, %arg3: memref<256x128xbf16, #tpu.memory_space<vmem>>, %arg4: memref<1x128xf32, #tpu.memory_space<vmem>>, %arg5: memref<2x128x128xbf16, #tpu.memory_space<vmem>>, %arg6: memref<2x1x128xf32, #tpu.memory_space<vmem>>, %arg7: memref<2x128x128xbf16, #tpu.memory_space<vmem>>, %arg8: memref<2x1x128xf32, #tpu.memory_space<vmem>>, %arg9: memref<128x128xbf16, #tpu.memory_space<vmem>>, %arg10: memref<1x128xf32, #tpu.memory_space<vmem>>, %arg11: memref<16x128xf32, #tpu.memory_space<vmem>>) attributes {dimension_semantics = [#tpu.dimension_semantics<parallel>], iteration_bounds = array<i64: 2>, scalar_prefetch = 0 : i64, scratch_operands = 0 : i64, tpu.core_type = #tpu.core_type<tc>, window_params = [{transform_indices = @transform_0, window_bounds = array<i64: 16, 128>}, {transform_indices = @transform_1, window_bounds = array<i64: 16, 128>}, {pipeline_mode = #tpu.pipeline_mode<synchronous>, transform_indices = @transform_2, window_bounds = array<i64: 256, 128>}, {pipeline_mode = #tpu.pipeline_mode<synchronous>, transform_indices = @transform_3, window_bounds = array<i64: 1, 128>}, {pipeline_mode = #tpu.pipeline_mode<synchronous>, transform_indices = @transform_4, window_bounds = array<i64: 2, 128, 128>}, {pipeline_mode = #tpu.pipeline_mode<synchronous>, transform_indices = @transform_5, window_bounds = array<i64: 2, 1, 128>}, {pipeline_mode = #tpu.pipeline_mode<synchronous>, transform_indices = @transform_6, window_bounds = array<i64: 2, 128, 128>}, {pipeline_mode = #tpu.pipeline_mode<synchronous>, transform_indices = @transform_7, window_bounds = array<i64: 2, 1, 128>}, {pipeline_mode = #tpu.pipeline_mode<synchronous>, transform_indices = @transform_8, window_bounds = array<i64: 128, 128>}, {pipeline_mode = #tpu.pipeline_mode<synchronous>, transform_indices = @transform_9, window_bounds = array<i64: 1, 128>}, {transform_indices = @transform_10, window_bounds = array<i64: 16, 128>}]} {
    %c0 = arith.constant 0 : index
    %c0_0 = arith.constant 0 : index
    %0 = vector.load %arg1[%c0, %c0_0] : memref<16x128xbf16, #tpu.memory_space<vmem>>, vector<16x128xbf16>
    %c0_1 = arith.constant 0 : index
    %c0_2 = arith.constant 0 : index
    %1 = vector.load %arg2[%c0_1, %c0_2] : memref<16x128xbf16, #tpu.memory_space<vmem>>, vector<16x128xbf16>
    %2 = tpu.concatenate %0, %1 in 1 : vector<16x128xbf16>, vector<16x128xbf16> -> vector<16x256xbf16>
    %c0_3 = arith.constant 0 : index
    %c0_4 = arith.constant 0 : index
    %3 = vector.load %arg3[%c0_3, %c0_4] : memref<256x128xbf16, #tpu.memory_space<vmem>>, vector<256x128xbf16>
    %cst = arith.constant dense<0.000000e+00> : vector<16x128xf32>
    %4 = tpu.matmul %2, %3, %cst {dimension_numbers = #tpu.dot_dimension_numbers<[1], [0], [0], [1], [0, 0, 1, 1], [], []>} : vector<16x256xbf16>, vector<256x128xbf16>, vector<16x128xf32> -> vector<16x128xf32>
    %c0_5 = arith.constant 0 : index
    %c0_6 = arith.constant 0 : index
    %5 = vector.load %arg4[%c0_5, %c0_6] : memref<1x128xf32, #tpu.memory_space<vmem>>, vector<1x128xf32>
    %6 = vector.broadcast %5 : vector<1x128xf32> to vector<16x128xf32>
    %7 = arith.addf %4, %6 : vector<16x128xf32>
    %cst_7 = arith.constant 0.000000e+00 : f32
    %8 = vector.broadcast %cst_7 : f32 to vector<16x128xf32>
    %9 = arith.maximumf %7, %8 : vector<16x128xf32>
    %10 = arith.truncf %9 : vector<16x128xf32> to vector<16x128xbf16>
    %c0_8 = arith.constant 0 : index
    %c0_9 = arith.constant 0 : index
    %c0_10 = arith.constant 0 : index
    %11 = vector.load %arg5[%c0_8, %c0_9, %c0_10] : memref<2x128x128xbf16, #tpu.memory_space<vmem>>, vector<1x128x128xbf16>
    %12 = vector.shape_cast %11 : vector<1x128x128xbf16> to vector<128x128xbf16>
    %cst_11 = arith.constant dense<0.000000e+00> : vector<16x128xf32>
    %13 = tpu.matmul %10, %12, %cst_11 {dimension_numbers = #tpu.dot_dimension_numbers<[1], [0], [0], [1], [0, 0, 1, 1], [], []>} : vector<16x128xbf16>, vector<128x128xbf16>, vector<16x128xf32> -> vector<16x128xf32>
    %c0_12 = arith.constant 0 : index
    %c0_13 = arith.constant 0 : index
    %c0_14 = arith.constant 0 : index
    %14 = vector.load %arg6[%c0_12, %c0_13, %c0_14] : memref<2x1x128xf32, #tpu.memory_space<vmem>>, vector<1x1x128xf32>
    %15 = vector.shape_cast %14 : vector<1x1x128xf32> to vector<1x128xf32>
    %16 = vector.broadcast %15 : vector<1x128xf32> to vector<16x128xf32>
    %17 = arith.addf %13, %16 : vector<16x128xf32>
    %cst_15 = arith.constant 0.000000e+00 : f32
    %18 = vector.broadcast %cst_15 : f32 to vector<16x128xf32>
    %19 = arith.maximumf %17, %18 : vector<16x128xf32>
    %20 = arith.truncf %19 : vector<16x128xf32> to vector<16x128xbf16>
    %c0_16 = arith.constant 0 : index
    %c0_17 = arith.constant 0 : index
    %c0_18 = arith.constant 0 : index
    %21 = vector.load %arg7[%c0_16, %c0_17, %c0_18] : memref<2x128x128xbf16, #tpu.memory_space<vmem>>, vector<1x128x128xbf16>
    %22 = vector.shape_cast %21 : vector<1x128x128xbf16> to vector<128x128xbf16>
    %cst_19 = arith.constant dense<0.000000e+00> : vector<16x128xf32>
    %23 = tpu.matmul %20, %22, %cst_19 {dimension_numbers = #tpu.dot_dimension_numbers<[1], [0], [0], [1], [0, 0, 1, 1], [], []>} : vector<16x128xbf16>, vector<128x128xbf16>, vector<16x128xf32> -> vector<16x128xf32>
    %c0_20 = arith.constant 0 : index
    %c0_21 = arith.constant 0 : index
    %c0_22 = arith.constant 0 : index
    %24 = vector.load %arg8[%c0_20, %c0_21, %c0_22] : memref<2x1x128xf32, #tpu.memory_space<vmem>>, vector<1x1x128xf32>
    %25 = vector.shape_cast %24 : vector<1x1x128xf32> to vector<1x128xf32>
    %26 = vector.broadcast %25 : vector<1x128xf32> to vector<16x128xf32>
    %27 = arith.addf %23, %26 : vector<16x128xf32>
    %28 = arith.addf %27, %9 : vector<16x128xf32>
    %cst_23 = arith.constant 0.000000e+00 : f32
    %29 = vector.broadcast %cst_23 : f32 to vector<16x128xf32>
    %30 = arith.maximumf %28, %29 : vector<16x128xf32>
    %31 = arith.truncf %30 : vector<16x128xf32> to vector<16x128xbf16>
    %c1 = arith.constant 1 : index
    %c0_24 = arith.constant 0 : index
    %c0_25 = arith.constant 0 : index
    %32 = vector.load %arg5[%c1, %c0_24, %c0_25] : memref<2x128x128xbf16, #tpu.memory_space<vmem>>, vector<1x128x128xbf16>
    %33 = vector.shape_cast %32 : vector<1x128x128xbf16> to vector<128x128xbf16>
    %cst_26 = arith.constant dense<0.000000e+00> : vector<16x128xf32>
    %34 = tpu.matmul %31, %33, %cst_26 {dimension_numbers = #tpu.dot_dimension_numbers<[1], [0], [0], [1], [0, 0, 1, 1], [], []>} : vector<16x128xbf16>, vector<128x128xbf16>, vector<16x128xf32> -> vector<16x128xf32>
    %c1_27 = arith.constant 1 : index
    %c0_28 = arith.constant 0 : index
    %c0_29 = arith.constant 0 : index
    %35 = vector.load %arg6[%c1_27, %c0_28, %c0_29] : memref<2x1x128xf32, #tpu.memory_space<vmem>>, vector<1x1x128xf32>
    %36 = vector.shape_cast %35 : vector<1x1x128xf32> to vector<1x128xf32>
    %37 = vector.broadcast %36 : vector<1x128xf32> to vector<16x128xf32>
    %38 = arith.addf %34, %37 : vector<16x128xf32>
    %cst_30 = arith.constant 0.000000e+00 : f32
    %39 = vector.broadcast %cst_30 : f32 to vector<16x128xf32>
    %40 = arith.maximumf %38, %39 : vector<16x128xf32>
    %41 = arith.truncf %40 : vector<16x128xf32> to vector<16x128xbf16>
    %c1_31 = arith.constant 1 : index
    %c0_32 = arith.constant 0 : index
    %c0_33 = arith.constant 0 : index
    %42 = vector.load %arg7[%c1_31, %c0_32, %c0_33] : memref<2x128x128xbf16, #tpu.memory_space<vmem>>, vector<1x128x128xbf16>
    %43 = vector.shape_cast %42 : vector<1x128x128xbf16> to vector<128x128xbf16>
    %cst_34 = arith.constant dense<0.000000e+00> : vector<16x128xf32>
    %44 = tpu.matmul %41, %43, %cst_34 {dimension_numbers = #tpu.dot_dimension_numbers<[1], [0], [0], [1], [0, 0, 1, 1], [], []>} : vector<16x128xbf16>, vector<128x128xbf16>, vector<16x128xf32> -> vector<16x128xf32>
    %c1_35 = arith.constant 1 : index
    %c0_36 = arith.constant 0 : index
    %c0_37 = arith.constant 0 : index
    %45 = vector.load %arg8[%c1_35, %c0_36, %c0_37] : memref<2x1x128xf32, #tpu.memory_space<vmem>>, vector<1x1x128xf32>
    %46 = vector.shape_cast %45 : vector<1x1x128xf32> to vector<1x128xf32>
    %47 = vector.broadcast %46 : vector<1x128xf32> to vector<16x128xf32>
    %48 = arith.addf %44, %47 : vector<16x128xf32>
    %49 = arith.addf %48, %30 : vector<16x128xf32>
    %cst_38 = arith.constant 0.000000e+00 : f32
    %50 = vector.broadcast %cst_38 : f32 to vector<16x128xf32>
    %51 = arith.maximumf %49, %50 : vector<16x128xf32>
    %52 = arith.truncf %51 : vector<16x128xf32> to vector<16x128xbf16>
    %c0_39 = arith.constant 0 : index
    %c0_40 = arith.constant 0 : index
    %53 = vector.load %arg9[%c0_39, %c0_40] : memref<128x128xbf16, #tpu.memory_space<vmem>>, vector<128x128xbf16>
    %cst_41 = arith.constant dense<0.000000e+00> : vector<16x128xf32>
    %54 = tpu.matmul %52, %53, %cst_41 {dimension_numbers = #tpu.dot_dimension_numbers<[1], [0], [0], [1], [0, 0, 1, 1], [], []>} : vector<16x128xbf16>, vector<128x128xbf16>, vector<16x128xf32> -> vector<16x128xf32>
    %c0_42 = arith.constant 0 : index
    %c0_43 = arith.constant 0 : index
    %55 = vector.load %arg10[%c0_42, %c0_43] : memref<1x128xf32, #tpu.memory_space<vmem>>, vector<1x128xf32>
    %56 = vector.broadcast %55 : vector<1x128xf32> to vector<16x128xf32>
    %57 = arith.addf %54, %56 : vector<16x128xf32>
    %cst_44 = arith.constant 0.000000e+00 : f32
    %58 = vector.broadcast %cst_44 : f32 to vector<16x128xf32>
    %59 = arith.maximumf %57, %58 : vector<16x128xf32>
    %c0_45 = arith.constant 0 : index
    %c0_46 = arith.constant 0 : index
    %60 = vector.load %arg11[%c0_45, %c0_46] : memref<16x128xf32, #tpu.memory_space<vmem>>, vector<16x128xf32>
    tpu.vector_store %arg11[%c0_45, %c0_46], %59 {strides = array<i32>} : memref<16x128xf32, #tpu.memory_space<vmem>>, vector<16x128xf32>,
    return
  }
  func.func @transform_0(%arg0: i32) -> (i32, i32) {
    %c0_i32 = arith.constant 0 : i32
    %c0_i32_0 = arith.constant 0 : i32
    return %arg0, %c0_i32 : i32, i32
  }
  func.func @transform_1(%arg0: i32) -> (i32, i32) {
    %c0_i32 = arith.constant 0 : i32
    %c0_i32_0 = arith.constant 0 : i32
    return %arg0, %c0_i32 : i32, i32
  }
  func.func @transform_2(%arg0: i32) -> (i32, i32) {
    %c0_i32 = arith.constant 0 : i32
    %c0_i32_0 = arith.constant 0 : i32
    %c0_i32_1 = arith.constant 0 : i32
    return %c0_i32, %c0_i32_0 : i32, i32
  }
  func.func @transform_3(%arg0: i32) -> (i32, i32) {
    %c0_i32 = arith.constant 0 : i32
    %c0_i32_0 = arith.constant 0 : i32
    %c0_i32_1 = arith.constant 0 : i32
    return %c0_i32, %c0_i32_0 : i32, i32
  }
  func.func @transform_4(%arg0: i32) -> (i32, i32, i32) {
    %c0_i32 = arith.constant 0 : i32
    %c0_i32_0 = arith.constant 0 : i32
    %c0_i32_1 = arith.constant 0 : i32
    %c0_i32_2 = arith.constant 0 : i32
    return %c0_i32, %c0_i32_0, %c0_i32_1 : i32, i32, i32
  }
  func.func @transform_5(%arg0: i32) -> (i32, i32, i32) {
    %c0_i32 = arith.constant 0 : i32
    %c0_i32_0 = arith.constant 0 : i32
    %c0_i32_1 = arith.constant 0 : i32
    %c0_i32_2 = arith.constant 0 : i32
    return %c0_i32, %c0_i32_0, %c0_i32_1 : i32, i32, i32
  }
  func.func @transform_6(%arg0: i32) -> (i32, i32, i32) {
    %c0_i32 = arith.constant 0 : i32
    %c0_i32_0 = arith.constant 0 : i32
    %c0_i32_1 = arith.constant 0 : i32
    %c0_i32_2 = arith.constant 0 : i32
    return %c0_i32, %c0_i32_0, %c0_i32_1 : i32, i32, i32
  }
  func.func @transform_7(%arg0: i32) -> (i32, i32, i32) {
    %c0_i32 = arith.constant 0 : i32
    %c0_i32_0 = arith.constant 0 : i32
    %c0_i32_1 = arith.constant 0 : i32
    %c0_i32_2 = arith.constant 0 : i32
    return %c0_i32, %c0_i32_0, %c0_i32_1 : i32, i32, i32
  }
  func.func @transform_8(%arg0: i32) -> (i32, i32) {
    %c0_i32 = arith.constant 0 : i32
    %c0_i32_0 = arith.constant 0 : i32
    %c0_i32_1 = arith.constant 0 : i32
    return %c0_i32, %c0_i32_0 : i32, i32
  }
  func.func @transform_9(%arg0: i32) -> (i32, i32) {
    %c0_i32 = arith.constant 0 : i32
    %c0_i32_0 = arith.constant 0 : i32
    %c0_i32_1 = arith.constant 0 : i32
    return %c0_i32, %c0_i32_0 : i32, i32
  }
  func.func @transform_10(%arg0: i32) -> (i32, i32) {
    %c0_i32 = arith.constant 0 : i32
    %c0_i32_0 = arith.constant 0 : i32
    return %arg0, %c0_i32 : i32, i32
  }
}

</mosaic_0001>

<llo_original>
// kernel: tpu_custom_call.1
$region0: #{tpu_custom_call.1}
  #allocation0 [shape = 'u32[]', space=smem, size = 0x4, offset = 0x4, fixed_abs, tag = 'smem constant byte address 0x4 - core index']
  #allocation1 [shape = 'u32[144,128]{1,0:T(1,128)}', space=vmem, size = 0x12000, scoped, tag = 'internal scratch']
  %s0 = inlined_call_operand.hbm [shape: bf16[32,128], index: 0, kind: input, shape index: {}]
  %s1 = inlined_call_operand.hbm [shape: bf16[32,128], index: 1, kind: input, shape index: {}]
  %s2 = inlined_call_operand.hbm [shape: bf16[256,128], index: 2, kind: input, shape index: {}]
  %s3 = inlined_call_operand.vmem [shape: f32[1,128], index: 3, kind: input, shape index: {}]
  %s4 = inlined_call_operand.hbm [shape: bf16[2,128,128], index: 4, kind: input, shape index: {}]
  %s5 = inlined_call_operand.vmem [shape: f32[2,1,128], index: 5, kind: input, shape index: {}]
  %s6 = inlined_call_operand.hbm [shape: bf16[2,128,128], index: 6, kind: input, shape index: {}]
  %s7 = inlined_call_operand.vmem [shape: f32[2,1,128], index: 7, kind: input, shape index: {}]
  %s8 = inlined_call_operand.hbm [shape: bf16[128,128], index: 8, kind: input, shape index: {}]
  %s9 = inlined_call_operand.vmem [shape: f32[1,128], index: 9, kind: input, shape index: {}]
  %s10 = inlined_call_operand.hbm [shape: f32[32,128], index: 10, kind: output, shape index: {}]
  %s11 = sld [smem:[#allocation0]]
  $region97: #{tpu_custom_call.1} parent=0
    _
  %s13 = ssub.s32 1, %s11
  %s14 = scalar_select 0, %s13, %s11
  $region1: #{tpu_custom_call.1} parent=0
    #allocation2 [shape = 'u8[8192]{0}', space=vmem, size = 0x2000, scoped, tag = 'input window, operand 0']
    #allocation3 [shape = 's32[2]{0}', space=sflag, size = 0x8, scoped, tag = 'scoped memory for tpu_custom_call.1']
    #allocation4 [shape = 's32[2]{0}', space=sflag, size = 0x8, scoped, tag = 'scoped memory for tpu_custom_call.1']
    #allocation5 [shape = 'u8[8192]{0}', space=vmem, size = 0x2000, scoped, tag = 'input window, operand 1']
    #allocation6 [shape = 's32[2]{0}', space=sflag, size = 0x8, scoped, tag = 'scoped memory for tpu_custom_call.1']
    #allocation7 [shape = 'u8[65536]{0}', space=vmem, size = 0x10000, scoped, tag = 'input window, operand 2, single buffered']
    #allocation8 [shape = 'u8[65536]{0}', space=vmem, size = 0x10000, scoped, tag = 'input window, operand 4, single buffered']
    #allocation9 [shape = 's32[1]{0}', space=sflag, size = 0x4, scoped, tag = 'scoped memory for tpu_custom_call.1']
    #allocation10 [shape = 'u8[65536]{0}', space=vmem, size = 0x10000, scoped, tag = 'input window, operand 6, single buffered']
    #allocation11 [shape = 'u8[32768]{0}', space=vmem, size = 0x8000, scoped, tag = 'input window, operand 8, single buffered']
    #allocation12 [shape = 's32[1]{0}', space=sflag, size = 0x4, scoped, tag = 'scoped memory for tpu_custom_call.1']
    #allocation13 [shape = 'u8[16384]{0}', space=vmem, size = 0x4000, scoped, tag = 'output window, operand 0']
    %15 = vsyncpa [#allocation3], 0
    %s16 = scalar_lea.sflag [#allocation3], 1
    %17 = vsyncpa %s16, 0
    %18 = vsyncpa [#allocation6], 0
    %s19 = scalar_lea.sflag [#allocation6], 1
    %20 = vsyncpa %s19, 0
    %21 = vsyncpa [#allocation9], 0
    %22 = vsyncpa [#allocation12], 0
    %23 = vsyncpa [#allocation4], 0
    %s24 = scalar_lea.sflag [#allocation4], 1
    %25 = vsyncpa %s24, 0
    loop: start=0, step=1, limit=4
    $region2: #{tpu_custom_call.1} parent=1 // loop_pre_header
      _
    $region3: #{tpu_custom_call.1} parent=1 // loop_header
      %s27 = sphi 0, %s31
      %p28 = scmp.ge.s32.totalorder %s27, 4
      %s37 = sphi 0, %s39
      %s40 = sphi 0, %s37
      %s41 = sphi 0, %s40
      %s57 = sphi 0, %s41
      %s63 = sphi 0, %s65
      %s66 = sphi 0, %s63
      %s67 = sphi 0, %s66
      %s83 = sphi 0, %s67
      %s87 = sphi 0, %s87
      %s89 = sphi 0, %s87
      %s90 = sphi 0, %s89
      %s104 = sphi 0, %s90
      %s108 = sphi 0, %s108
      %s110 = sphi 0, %s108
      %s111 = sphi 0, %s110
      %s125 = sphi 0, %s111
      %s129 = sphi 0, %s129
      %s131 = sphi 0, %s129
      %s132 = sphi 0, %s131
      %s146 = sphi 0, %s132
      %s150 = sphi 0, %s150
      %s152 = sphi 0, %s150
      %s153 = sphi 0, %s152
      %s167 = sphi 0, %s153
      %s171 = sphi 0, %s171
      %s173 = sphi 0, %s171
      %s174 = sphi 0, %s173
      %s188 = sphi 0, %s174
      %s192 = sphi 0, %s192
      %s194 = sphi 0, %s192
      %s195 = sphi 0, %s194
      %s209 = sphi 0, %s195
      %s213 = sphi 0, %s213
      %s215 = sphi 0, %s213
      %s216 = sphi 0, %s215
      %s230 = sphi 0, %s216
      %s234 = sphi 0, %s234
      %s236 = sphi 0, %s234
      %s237 = sphi 0, %s236
      %s251 = sphi 0, %s237
      %s257 = sphi 0, %s259
      %s260 = sphi 0, %s257
      %s261 = sphi 0, %s260
      %s277 = sphi 0, %s261
    $region4: #{tpu_custom_call.1} parent=1 // loop_header_branch
      %30 = sbr.rel (%p28) target = $region8
    $region5: #{tpu_custom_call.1} parent=1 // loop_body
      %s32 = ssub.s32 %s27, 1
      %s33 = ssub.s32 %s27, 2
      %s34 = sadd.s32 %s27, 1
      %s35 = ssub.s32 %s27, %s34
      %p36 = scmp.eq.s32.totalorder %s35, 0
      %s38 = sadd.s32 %s37, 1
      %s39 = scalar_select %p36, %s37, %s38
      %p42 = pneg %p36
      %p43 = scmp.eq.s32.totalorder %s27, 1
      %p44 = por %p42, %p43
      %p45 = scmp.ne.s32.totalorder %s37, %s40
      %p46 = scmp.eq.s32.totalorder %s27, 0
      %p47 = por %p45, %p46
      %p48 = scmp.ne.s32.totalorder %s37, %s40
      %p49 = scmp.eq.s32.totalorder %s32, 1
      %p50 = por %p48, %p49
      %p51 = scmp.ne.s32.totalorder %s40, %s41
      %p52 = scmp.eq.s32.totalorder %s32, 0
      %p53 = por %p51, %p52
      %p54 = scmp.ne.s32.totalorder %s40, %s41
      %p55 = scmp.eq.s32.totalorder %s33, 1
      %p56 = por %p54, %p55
      %p58 = scmp.ne.s32.totalorder %s41, %s57
      %p59 = scmp.eq.s32.totalorder %s33, 0
      %p60 = por %p58, %p59
      %s61 = ssub.s32 %s27, %s34
      %p62 = scmp.eq.s32.totalorder %s61, 0
      %s64 = sadd.s32 %s63, 1
      %s65 = scalar_select %p62, %s63, %s64
      %p68 = pneg %p62
      %p69 = scmp.eq.s32.totalorder %s27, 1
      %p70 = por %p68, %p69
      %p71 = scmp.ne.s32.totalorder %s63, %s66
      %p72 = scmp.eq.s32.totalorder %s27, 0
      %p73 = por %p71, %p72
      %p74 = scmp.ne.s32.totalorder %s63, %s66
      %p75 = scmp.eq.s32.totalorder %s32, 1
      %p76 = por %p74, %p75
      %p77 = scmp.ne.s32.totalorder %s66, %s67
      %p78 = scmp.eq.s32.totalorder %s32, 0
      %p79 = por %p77, %p78
      %p80 = scmp.ne.s32.totalorder %s66, %s67
      %p81 = scmp.eq.s32.totalorder %s33, 1
      %p82 = por %p80, %p81
      %p84 = scmp.ne.s32.totalorder %s67, %s83
      %p85 = scmp.eq.s32.totalorder %s33, 0
      %p86 = por %p84, %p85
      %s88 = sadd.s32 %s87, 1
      %p91 = scmp.eq.s32.totalorder %s27, 1
      %p92 = scmp.ne.s32.totalorder %s87, %s89
      %p93 = scmp.eq.s32.totalorder %s27, 0
      %p94 = por %p92, %p93
      %p95 = scmp.ne.s32.totalorder %s87, %s89
      %p96 = scmp.eq.s32.totalorder %s32, 1
      %p97 = por %p95, %p96
      %p98 = scmp.ne.s32.totalorder %s89, %s90
      %p99 = scmp.eq.s32.totalorder %s32, 0
      %p100 = por %p98, %p99
      %p101 = scmp.ne.s32.totalorder %s89, %s90
      %p102 = scmp.eq.s32.totalorder %s33, 1
      %p103 = por %p101, %p102
      %p105 = scmp.ne.s32.totalorder %s90, %s104
      %p106 = scmp.eq.s32.totalorder %s33, 0
      %p107 = por %p105, %p106
      %s109 = sadd.s32 %s108, 1
      %p112 = scmp.eq.s32.totalorder %s27, 1
      %p113 = scmp.ne.s32.totalorder %s108, %s110
      %p114 = scmp.eq.s32.totalorder %s27, 0
      %p115 = por %p113, %p114
      %p116 = scmp.ne.s32.totalorder %s108, %s110
      %p117 = scmp.eq.s32.totalorder %s32, 1
      %p118 = por %p116, %p117
      %p119 = scmp.ne.s32.totalorder %s110, %s111
      %p120 = scmp.eq.s32.totalorder %s32, 0
      %p121 = por %p119, %p120
      %p122 = scmp.ne.s32.totalorder %s110, %s111
      %p123 = scmp.eq.s32.totalorder %s33, 1
      %p124 = por %p122, %p123
      %p126 = scmp.ne.s32.totalorder %s111, %s125
      %p127 = scmp.eq.s32.totalorder %s33, 0
      %p128 = por %p126, %p127
      %s130 = sadd.s32 %s129, 1
      %p133 = scmp.eq.s32.totalorder %s27, 1
      %p134 = scmp.ne.s32.totalorder %s129, %s131
      %p135 = scmp.eq.s32.totalorder %s27, 0
      %p136 = por %p134, %p135
      %p137 = scmp.ne.s32.totalorder %s129, %s131
      %p138 = scmp.eq.s32.totalorder %s32, 1
      %p139 = por %p137, %p138
      %p140 = scmp.ne.s32.totalorder %s131, %s132
      %p141 = scmp.eq.s32.totalorder %s32, 0
      %p142 = por %p140, %p141
      %p143 = scmp.ne.s32.totalorder %s131, %s132
      %p144 = scmp.eq.s32.totalorder %s33, 1
      %p145 = por %p143, %p144
      %p147 = scmp.ne.s32.totalorder %s132, %s146
      %p148 = scmp.eq.s32.totalorder %s33, 0
      %p149 = por %p147, %p148
      %s151 = sadd.s32 %s150, 1
      %p154 = scmp.eq.s32.totalorder %s27, 1
      %p155 = scmp.ne.s32.totalorder %s150, %s152
      %p156 = scmp.eq.s32.totalorder %s27, 0
      %p157 = por %p155, %p156
      %p158 = scmp.ne.s32.totalorder %s150, %s152
      %p159 = scmp.eq.s32.totalorder %s32, 1
      %p160 = por %p158, %p159
      %p161 = scmp.ne.s32.totalorder %s152, %s153
      %p162 = scmp.eq.s32.totalorder %s32, 0
      %p163 = por %p161, %p162
      %p164 = scmp.ne.s32.totalorder %s152, %s153
      %p165 = scmp.eq.s32.totalorder %s33, 1
      %p166 = por %p164, %p165
      %p168 = scmp.ne.s32.totalorder %s153, %s167
      %p169 = scmp.eq.s32.totalorder %s33, 0
      %p170 = por %p168, %p169
      %s172 = sadd.s32 %s171, 1
      %p175 = scmp.eq.s32.totalorder %s27, 1
      %p176 = scmp.ne.s32.totalorder %s171, %s173
      %p177 = scmp.eq.s32.totalorder %s27, 0
      %p178 = por %p176, %p177
      %p179 = scmp.ne.s32.totalorder %s171, %s173
      %p180 = scmp.eq.s32.totalorder %s32, 1
      %p181 = por %p179, %p180
      %p182 = scmp.ne.s32.totalorder %s173, %s174
      %p183 = scmp.eq.s32.totalorder %s32, 0
      %p184 = por %p182, %p183
      %p185 = scmp.ne.s32.totalorder %s173, %s174
      %p186 = scmp.eq.s32.totalorder %s33, 1
      %p187 = por %p185, %p186
      %p189 = scmp.ne.s32.totalorder %s174, %s188
      %p190 = scmp.eq.s32.totalorder %s33, 0
      %p191 = por %p189, %p190
      %s193 = sadd.s32 %s192, 1
      %p196 = scmp.eq.s32.totalorder %s27, 1
      %p197 = scmp.ne.s32.totalorder %s192, %s194
      %p198 = scmp.eq.s32.totalorder %s27, 0
      %p199 = por %p197, %p198
      %p200 = scmp.ne.s32.totalorder %s192, %s194
      %p201 = scmp.eq.s32.totalorder %s32, 1
      %p202 = por %p200, %p201
      %p203 = scmp.ne.s32.totalorder %s194, %s195
      %p204 = scmp.eq.s32.totalorder %s32, 0
      %p205 = por %p203, %p204
      %p206 = scmp.ne.s32.totalorder %s194, %s195
      %p207 = scmp.eq.s32.totalorder %s33, 1
      %p208 = por %p206, %p207
      %p210 = scmp.ne.s32.totalorder %s195, %s209
      %p211 = scmp.eq.s32.totalorder %s33, 0
      %p212 = por %p210, %p211
      %s214 = sadd.s32 %s213, 1
      %p217 = scmp.eq.s32.totalorder %s27, 1
      %p218 = scmp.ne.s32.totalorder %s213, %s215
      %p219 = scmp.eq.s32.totalorder %s27, 0
      %p220 = por %p218, %p219
      %p221 = scmp.ne.s32.totalorder %s213, %s215
      %p222 = scmp.eq.s32.totalorder %s32, 1
      %p223 = por %p221, %p222
      %p224 = scmp.ne.s32.totalorder %s215, %s216
      %p225 = scmp.eq.s32.totalorder %s32, 0
      %p226 = por %p224, %p225
      %p227 = scmp.ne.s32.totalorder %s215, %s216
      %p228 = scmp.eq.s32.totalorder %s33, 1
      %p229 = por %p227, %p228
      %p231 = scmp.ne.s32.totalorder %s216, %s230
      %p232 = scmp.eq.s32.totalorder %s33, 0
      %p233 = por %p231, %p232
      %s235 = sadd.s32 %s234, 1
      %p238 = scmp.eq.s32.totalorder %s27, 1
      %p239 = scmp.ne.s32.totalorder %s234, %s236
      %p240 = scmp.eq.s32.totalorder %s27, 0
      %p241 = por %p239, %p240
      %p242 = scmp.ne.s32.totalorder %s234, %s236
      %p243 = scmp.eq.s32.totalorder %s32, 1
      %p244 = por %p242, %p243
      %p245 = scmp.ne.s32.totalorder %s236, %s237
      %p246 = scmp.eq.s32.totalorder %s32, 0
      %p247 = por %p245, %p246
      %p248 = scmp.ne.s32.totalorder %s236, %s237
      %p249 = scmp.eq.s32.totalorder %s33, 1
      %p250 = por %p248, %p249
      %p252 = scmp.ne.s32.totalorder %s237, %s251
      %p253 = scmp.eq.s32.totalorder %s33, 0
      %p254 = por %p252, %p253
      %s255 = ssub.s32 %s27, %s34
      %p256 = scmp.eq.s32.totalorder %s255, 0
      %s258 = sadd.s32 %s257, 1
      %s259 = scalar_select %p256, %s257, %s258
      %p262 = pneg %p256
      %p263 = scmp.eq.s32.totalorder %s27, 1
      %p264 = por %p262, %p263
      %p265 = scmp.ne.s32.totalorder %s257, %s260
      %p266 = scmp.eq.s32.totalorder %s27, 0
      %p267 = por %p265, %p266
      %p268 = scmp.ne.s32.totalorder %s257, %s260
      %p269 = scmp.eq.s32.totalorder %s32, 1
      %p270 = por %p268, %p269
      %p271 = scmp.ne.s32.totalorder %s260, %s261
      %p272 = scmp.eq.s32.totalorder %s32, 0
      %p273 = por %p271, %p272
      %p274 = scmp.ne.s32.totalorder %s260, %s261
      %p275 = scmp.eq.s32.totalorder %s33, 1
      %p276 = por %p274, %p275
      %p278 = scmp.ne.s32.totalorder %s261, %s277
      %p279 = scmp.eq.s32.totalorder %s33, 0
      %p280 = por %p278, %p279
      %p281 = scmp.le.s32.totalorder 1, %s27
      %p282 = scmp.lt.s32.totalorder %s27, 3
      %p283 = pnand %p281, %p282
      %p284 = pneg %p283
      // Predicated region
      $region9: #{tpu_custom_call.1} parent=5 // pred_check
        _
      $region10: #{tpu_custom_call.1} parent=5 // pred_check_branch
        %286 = sbr.rel (%p283) target = $region12
      $region11: #{tpu_custom_call.1} parent=5 // pred_region
        %s287 = ssub.s32 %s27, 1
        // Predicated region
        $region13: #{tpu_custom_call.1} parent=11 // pred_check
          %p288 = pneg %p100
        $region14: #{tpu_custom_call.1} parent=11 // pred_check_branch
          %290 = sbr.rel (%p288) target = $region16
        $region15: #{tpu_custom_call.1} parent=11 // pred_region
          %s292 = ssub.s32 2048, 2048
          %293 = vsyncadd [#allocation6], %s292
          %s294 = sshll.u32 [#allocation7], 4
          %s295 = int_to_ptr.vmem [resolvable:$true] %s294
          %300 = dma.hbm_to_vmem [thread:$0]  %s2, 2048, %s295, [#allocation6], 64, 64, 4
        $region16: #{tpu_custom_call.1} parent=11 // pred_fallthru
          _
        // Predicated region
        $region17: #{tpu_custom_call.1} parent=11 // pred_check
          %p301 = pneg %p121
        $region18: #{tpu_custom_call.1} parent=11 // pred_check_branch
          %303 = sbr.rel (%p301) target = $region20
        $region19: #{tpu_custom_call.1} parent=11 // pred_region
          _
        $region20: #{tpu_custom_call.1} parent=11 // pred_fallthru
          _
        // Predicated region
        $region21: #{tpu_custom_call.1} parent=11 // pred_check
          %p304 = pneg %p142
        $region22: #{tpu_custom_call.1} parent=11 // pred_check_branch
          %306 = sbr.rel (%p304) target = $region24
        $region23: #{tpu_custom_call.1} parent=11 // pred_region
          %s308 = ssub.s32 2048, 2048
          %309 = vsyncadd [#allocation9], %s308
          %s310 = sshll.u32 [#allocation8], 4
          %s311 = int_to_ptr.vmem [resolvable:$true] %s310
          %316 = dma.hbm_to_vmem [thread:$0]  %s4, 2048, %s311, [#allocation9], 64, 64, 4
        $region24: #{tpu_custom_call.1} parent=11 // pred_fallthru
          _
        // Predicated region
        $region25: #{tpu_custom_call.1} parent=11 // pred_check
          %p317 = pneg %p163
        $region26: #{tpu_custom_call.1} parent=11 // pred_check_branch
          %319 = sbr.rel (%p317) target = $region28
        $region27: #{tpu_custom_call.1} parent=11 // pred_region
          _
        $region28: #{tpu_custom_call.1} parent=11 // pred_fallthru
          _
        // Predicated region
        $region29: #{tpu_custom_call.1} parent=11 // pred_check
          %p320 = pneg %p184
        $region30: #{tpu_custom_call.1} parent=11 // pred_check_branch
          %322 = sbr.rel (%p320) target = $region32
        $region31: #{tpu_custom_call.1} parent=11 // pred_region
          %s324 = ssub.s32 2048, 2048
          %325 = vsyncadd [#allocation9], %s324
          %s326 = sshll.u32 [#allocation10], 4
          %s327 = int_to_ptr.vmem [resolvable:$true] %s326
          %332 = dma.hbm_to_vmem [thread:$0]  %s6, 2048, %s327, [#allocation9], 64, 64, 4
        $region32: #{tpu_custom_call.1} parent=11 // pred_fallthru
          _
        // Predicated region
        $region33: #{tpu_custom_call.1} parent=11 // pred_check
          %p333 = pneg %p205
        $region34: #{tpu_custom_call.1} parent=11 // pred_check_branch
          %335 = sbr.rel (%p333) target = $region36
        $region35: #{tpu_custom_call.1} parent=11 // pred_region
          _
        $region36: #{tpu_custom_call.1} parent=11 // pred_fallthru
          _
        // Predicated region
        $region37: #{tpu_custom_call.1} parent=11 // pred_check
          %p336 = pneg %p226
        $region38: #{tpu_custom_call.1} parent=11 // pred_check_branch
          %338 = sbr.rel (%p336) target = $region40
        $region39: #{tpu_custom_call.1} parent=11 // pred_region
          %s340 = ssub.s32 1024, 1024
          %341 = vsyncadd [#allocation12], %s340
          %s342 = sshll.u32 [#allocation11], 4
          %s343 = int_to_ptr.vmem [resolvable:$true] %s342
          %348 = dma.hbm_to_vmem [thread:$0]  %s8, 1024, %s343, [#allocation12], 64, 64, 4
        $region40: #{tpu_custom_call.1} parent=11 // pred_fallthru
          _
        // Predicated region
        $region41: #{tpu_custom_call.1} parent=11 // pred_check
          %p349 = pneg %p247
        $region42: #{tpu_custom_call.1} parent=11 // pred_check_branch
          %351 = sbr.rel (%p349) target = $region44
        $region43: #{tpu_custom_call.1} parent=11 // pred_region
          _
        $region44: #{tpu_custom_call.1} parent=11 // pred_fallthru
          _
      $region12: #{tpu_custom_call.1} parent=5 // pred_fallthru
        _
      %p352 = scmp.lt.s32.totalorder %s27, 2
      // Predicated region
      $region45: #{tpu_custom_call.1} parent=5 // pred_check
        %p353 = pneg %p352
      $region46: #{tpu_custom_call.1} parent=5 // pred_check_branch
        %355 = sbr.rel (%p353) target = $region48
      $region47: #{tpu_custom_call.1} parent=5 // pred_region
        // Predicated region
        $region49: #{tpu_custom_call.1} parent=47 // pred_check
          %p356 = pneg %p47
        $region50: #{tpu_custom_call.1} parent=47 // pred_check_branch
          %358 = sbr.rel (%p356) target = $region52
        $region51: #{tpu_custom_call.1} parent=47 // pred_region
          %s359 = sand.u32 %s37, 1
          %s360 = scalar_lea.sflag [#allocation3], %s359
          %s361 = sand.u32 %s37, 1
          %s362 = smul.addr %s361, 8
          %s363 = scalar_lea.vmem [#allocation2], %s362
          %s364 = smul.u32 2, %s27
          %s366 = ssub.s32 128, 128
          %367 = vsyncadd %s360, %s366
          %s368 = smul.addr %s364, 64
          %s369 = scalar_lea.hbm %s0, %s368
          %s370 = sshll.u32 %s363, 4
          %s371 = int_to_ptr.vmem [resolvable:$true] %s370
          %376 = dma.hbm_to_vmem [thread:$0]  %s369, 128, %s371, %s360, 64, 64, 4
        $region52: #{tpu_custom_call.1} parent=47 // pred_fallthru
          _
        // Predicated region
        $region53: #{tpu_custom_call.1} parent=47 // pred_check
          %p377 = pneg %p73
        $region54: #{tpu_custom_call.1} parent=47 // pred_check_branch
          %379 = sbr.rel (%p377) target = $region56
        $region55: #{tpu_custom_call.1} parent=47 // pred_region
          %s380 = sand.u32 %s27, 1
          %s381 = scalar_lea.sflag [#allocation6], %s380
          %s382 = sand.u32 %s63, 1
          %s383 = smul.addr %s382, 8
          %s384 = scalar_lea.vmem [#allocation5], %s383
          %s385 = smul.u32 2, %s27
          %s387 = ssub.s32 128, 128
          %388 = vsyncadd %s381, %s387
          %s389 = smul.addr %s385, 64
          %s390 = scalar_lea.hbm %s1, %s389
          %s391 = sshll.u32 %s384, 4
          %s392 = int_to_ptr.vmem [resolvable:$true] %s391
          %397 = dma.hbm_to_vmem [thread:$0]  %s390, 128, %s392, %s381, 64, 64, 4
        $region56: #{tpu_custom_call.1} parent=47 // pred_fallthru
          _
      $region48: #{tpu_custom_call.1} parent=5 // pred_fallthru
        _
      %p398 = scmp.le.s32.totalorder 1, %s27
      %p399 = scmp.lt.s32.totalorder %s27, 3
      %p400 = pnand %p398, %p399
      %p401 = pneg %p400
      // Predicated region
      $region57: #{tpu_custom_call.1} parent=5 // pred_check
        _
      $region58: #{tpu_custom_call.1} parent=5 // pred_check_branch
        %403 = sbr.rel (%p400) target = $region60
      $region59: #{tpu_custom_call.1} parent=5 // pred_region
        %s404 = ssub.s32 %s27, 1
        %s405 = sand.u32 %s40, 1
        %s406 = scalar_lea.sflag [#allocation3], %s405
        %s407 = sand.u32 %s40, 1
        %s408 = smul.addr %s407, 8
        %s409 = scalar_lea.vmem [#allocation2], %s408
        // Predicated region
        $region61: #{tpu_custom_call.1} parent=59 // pred_check
          %p410 = pneg %p53
        $region62: #{tpu_custom_call.1} parent=59 // pred_check_branch
          %412 = sbr.rel (%p410) target = $region64
        $region63: #{tpu_custom_call.1} parent=59 // pred_region
          %413 = dma.done %s406, 128
        $region64: #{tpu_custom_call.1} parent=59 // pred_fallthru
          _
        %s414 = sand.u32 %s32, 1
        %s415 = scalar_lea.sflag [#allocation6], %s414
        %s416 = sand.u32 %s66, 1
        %s417 = smul.addr %s416, 8
        %s418 = scalar_lea.vmem [#allocation5], %s417
        // Predicated region
        $region65: #{tpu_custom_call.1} parent=59 // pred_check
          %p419 = pneg %p79
        $region66: #{tpu_custom_call.1} parent=59 // pred_check_branch
          %421 = sbr.rel (%p419) target = $region68
        $region67: #{tpu_custom_call.1} parent=59 // pred_region
          %422 = dma.done %s415, 128
        $region68: #{tpu_custom_call.1} parent=59 // pred_fallthru
          _
        // Predicated region
        $region69: #{tpu_custom_call.1} parent=59 // pred_check
          %p423 = pneg %p100
        $region70: #{tpu_custom_call.1} parent=59 // pred_check_branch
          %425 = sbr.rel (%p423) target = $region72
        $region71: #{tpu_custom_call.1} parent=59 // pred_region
          %426 = dma.done [#allocation6], 2048
        $region72: #{tpu_custom_call.1} parent=59 // pred_fallthru
          _
        // Predicated region
        $region73: #{tpu_custom_call.1} parent=59 // pred_check
          %p427 = pneg %p142
        $region74: #{tpu_custom_call.1} parent=59 // pred_check_branch
          %429 = sbr.rel (%p427) target = $region76
        $region75: #{tpu_custom_call.1} parent=59 // pred_region
          %430 = dma.done [#allocation9], 2048
        $region76: #{tpu_custom_call.1} parent=59 // pred_fallthru
          _
        // Predicated region
        $region77: #{tpu_custom_call.1} parent=59 // pred_check
          %p431 = pneg %p184
        $region78: #{tpu_custom_call.1} parent=59 // pred_check_branch
          %433 = sbr.rel (%p431) target = $region80
        $region79: #{tpu_custom_call.1} parent=59 // pred_region
          %434 = dma.done [#allocation9], 2048
        $region80: #{tpu_custom_call.1} parent=59 // pred_fallthru
          _
        // Predicated region
        $region81: #{tpu_custom_call.1} parent=59 // pred_check
          %p435 = pneg %p226
        $region82: #{tpu_custom_call.1} parent=59 // pred_check_branch
          %437 = sbr.rel (%p435) target = $region84
        $region83: #{tpu_custom_call.1} parent=59 // pred_region
          %438 = dma.done [#allocation12], 1024
        $region84: #{tpu_custom_call.1} parent=59 // pred_fallthru
          _
        %s439 = sand.u32 %s40, 1
        %s440 = scalar_lea.sflag [#allocation3], %s439
        %s441 = sand.u32 %s40, 1
        %s442 = smul.addr %s441, 8
        %s443 = scalar_lea.vmem [#allocation2], %s442
        %p444 = pneg %p53
        %p445 = pneg %p50
        %s446 = sand.u32 %s32, 1
        %s447 = scalar_lea.sflag [#allocation6], %s446
        %s448 = sand.u32 %s66, 1
        %s449 = smul.addr %s448, 8
        %s450 = scalar_lea.vmem [#allocation5], %s449
        %p451 = pneg %p79
        %p452 = pneg %p76
        %p453 = pneg %p100
        %p454 = pneg %p97
        %p455 = pneg %p121
        %p456 = pneg %p118
        %p457 = pneg %p142
        %p458 = pneg %p139
        %p459 = pneg %p163
        %p460 = pneg %p160
        %p461 = pneg %p184
        %p462 = pneg %p181
        %p463 = pneg %p205
        %p464 = pneg %p202
        %p465 = pneg %p226
        %p466 = pneg %p223
        %p467 = pneg %p247
        %p468 = pneg %p244
        %p469 = pneg %p273
        %p470 = pneg %p270
        %s471 = sand.u32 %s260, 1
        %s472 = scalar_lea.sflag [#allocation4], %s471
        %s473 = sand.u32 %s260, 1
        %s474 = smul.addr %s473, 16
        %s475 = scalar_lea.vmem [#allocation13], %s474
        %s476 = smul.u32 2, %s32
        %s477 = smul.u32 2, %s32
        %s478 = smul.u32 2, %s32
        %v480 = vld [vmem:[%s409] sm:$0xf]
        %v481 = vld [vmem:[%s409 + $0x4] sm:$0xf]
        %v482 = vld [vmem:[%s418] sm:$0xf]
        %v483 = vld [vmem:[%s418 + $0x4] sm:$0xf]
        %v486 = vunpack.c.l.b16 %v480
        %v487 = vunpack.c.l.b16 %v481
        %v488 = vpack.c.b16 %v487, %v486
        %v492 = vunpack.c.l.b16 %v482
        %v493 = vunpack.c.l.b16 %v483
        %v494 = vpack.c.b16 %v493, %v492
        %v496 = vld [vmem:[#allocation7] sm:$0xf]
        %v497 = vld [vmem:[#allocation7 + $0x4] sm:$0xf]
        %v498 = vld [vmem:[#allocation7 + $0x8] sm:$0xf]
        %v499 = vld [vmem:[#allocation7 + $0xc] sm:$0xf]
        %v500 = vld [vmem:[#allocation7 + $0x10] sm:$0xf]
        %v501 = vld [vmem:[#allocation7 + $0x14] sm:$0xf]
        %v502 = vld [vmem:[#allocation7 + $0x18] sm:$0xf]
        %v503 = vld [vmem:[#allocation7 + $0x1c] sm:$0xf]
        %v504 = vld [vmem:[#allocation7 + $0x20] sm:$0xf]
        %v505 = vld [vmem:[#allocation7 + $0x24] sm:$0xf]
        %v506 = vld [vmem:[#allocation7 + $0x28] sm:$0xf]
        %v507 = vld [vmem:[#allocation7 + $0x2c] sm:$0xf]
        %v508 = vld [vmem:[#allocation7 + $0x30] sm:$0xf]
        %v509 = vld [vmem:[#allocation7 + $0x34] sm:$0xf]
        %v510 = vld [vmem:[#allocation7 + $0x38] sm:$0xf]
        %v511 = vld [vmem:[#allocation7 + $0x3c] sm:$0xf]
        %v512 = vld [vmem:[#allocation7 + $0x40] sm:$0xf]
        %v513 = vld [vmem:[#allocation7 + $0x44] sm:$0xf]
        %v514 = vld [vmem:[#allocation7 + $0x48] sm:$0xf]
        %v515 = vld [vmem:[#allocation7 + $0x4c] sm:$0xf]
        %v516 = vld [vmem:[#allocation7 + $0x50] sm:$0xf]
        %v517 = vld [vmem:[#allocation7 + $0x54] sm:$0xf]
        %v518 = vld [vmem:[#allocation7 + $0x58] sm:$0xf]
        %v519 = vld [vmem:[#allocation7 + $0x5c] sm:$0xf]
        %v520 = vld [vmem:[#allocation7 + $0x60] sm:$0xf]
        %v521 = vld [vmem:[#allocation7 + $0x64] sm:$0xf]
        %v522 = vld [vmem:[#allocation7 + $0x68] sm:$0xf]
        %v523 = vld [vmem:[#allocation7 + $0x6c] sm:$0xf]
        %v524 = vld [vmem:[#allocation7 + $0x70] sm:$0xf]
        %v525 = vld [vmem:[#allocation7 + $0x74] sm:$0xf]
        %v526 = vld [vmem:[#allocation7 + $0x78] sm:$0xf]
        %v527 = vld [vmem:[#allocation7 + $0x7c] sm:$0xf]
        %v528 = vld [vmem:[%s3] sm:$0x1]
        %v530 = vlaneseq
        %v531 = vshrl.u32 %v530, 7
        %v532 = vsub.s32 0, %v531
        %v533 = vrot.slane %v528, %v532
        %v567 = vunpack.c.l.b16 %v496
        %v568 = vunpack.c.l.b16 %v497
        %v569 = vunpack.c.l.b16 %v498
        %v570 = vunpack.c.l.b16 %v499
        %v571 = vunpack.c.l.b16 %v500
        %v572 = vunpack.c.l.b16 %v501
        %v573 = vunpack.c.l.b16 %v502
        %v574 = vunpack.c.l.b16 %v503
        %v575 = vunpack.c.l.b16 %v504
        %v576 = vunpack.c.l.b16 %v505
        %v577 = vunpack.c.l.b16 %v506
        %v578 = vunpack.c.l.b16 %v507
        %v579 = vunpack.c.l.b16 %v508
        %v580 = vunpack.c.l.b16 %v509
        %v581 = vunpack.c.l.b16 %v510
        %v582 = vunpack.c.l.b16 %v511
        %v583 = vunpack.c.l.b16 %v512
        %v584 = vunpack.c.l.b16 %v513
        %v585 = vunpack.c.l.b16 %v514
        %v586 = vunpack.c.l.b16 %v515
        %v587 = vunpack.c.l.b16 %v516
        %v588 = vunpack.c.l.b16 %v517
        %v589 = vunpack.c.l.b16 %v518
        %v590 = vunpack.c.l.b16 %v519
        %v591 = vunpack.c.l.b16 %v520
        %v592 = vunpack.c.l.b16 %v521
        %v593 = vunpack.c.l.b16 %v522
        %v594 = vunpack.c.l.b16 %v523
        %v595 = vunpack.c.l.b16 %v524
        %v596 = vunpack.c.l.b16 %v525
        %v597 = vunpack.c.l.b16 %v526
        %v598 = vunpack.c.l.b16 %v527
        %v599 = vpack.c.b16 %v568, %v567
        %v600 = vpack.c.b16 %v570, %v569
        %v601 = vpack.c.b16 %v572, %v571
        %v602 = vpack.c.b16 %v574, %v573
        %v603 = vpack.c.b16 %v576, %v575
        %v604 = vpack.c.b16 %v578, %v577
        %v605 = vpack.c.b16 %v580, %v579
        %v606 = vpack.c.b16 %v582, %v581
        %v607 = vpack.c.b16 %v584, %v583
        %v608 = vpack.c.b16 %v586, %v585
        %v609 = vpack.c.b16 %v588, %v587
        %v610 = vpack.c.b16 %v590, %v589
        %v611 = vpack.c.b16 %v592, %v591
        %v612 = vpack.c.b16 %v594, %v593
        %v613 = vpack.c.b16 %v596, %v595
        %v614 = vpack.c.b16 %v598, %v597
        %631 = vmatprep.subr.bf16.mxu0 0
        %632 = vmatpush1.bf16.msra.mxu0 %v599
        %633 = vmatprep.subr.bf16.mxu0 0
        %634 = vmatpush1.bf16.msra.mxu0 %v600
        %635 = vmatprep.subr.bf16.mxu0 0
        %636 = vmatpush1.bf16.msra.mxu0 %v601
        %637 = vmatprep.subr.bf16.mxu0 0
        %638 = vmatpush1.bf16.msra.mxu0 %v602
        %639 = vmatprep.subr.bf16.mxu0 0
        %640 = vmatpush1.bf16.msra.mxu0 %v603
        %641 = vmatprep.subr.bf16.mxu0 0
        %642 = vmatpush1.bf16.msra.mxu0 %v604
        %643 = vmatprep.subr.bf16.mxu0 0
        %644 = vmatpush1.bf16.msra.mxu0 %v605
        %645 = vmatprep.subr.bf16.mxu0 0
        %646 = vmatpush1.bf16.msra.mxu0 %v606
        %647 = vmatprep.subr.bf16.mxu0 0
        %648 = vmatpush1.bf16.msra.mxu0 %v607
        %649 = vmatprep.subr.bf16.mxu0 0
        %650 = vmatpush1.bf16.msra.mxu0 %v608
        %651 = vmatprep.subr.bf16.mxu0 0
        %652 = vmatpush1.bf16.msra.mxu0 %v609
        %653 = vmatprep.subr.bf16.mxu0 0
        %654 = vmatpush1.bf16.msra.mxu0 %v610
        %655 = vmatprep.subr.bf16.mxu0 0
        %656 = vmatpush1.bf16.msra.mxu0 %v611
        %657 = vmatprep.subr.bf16.mxu0 0
        %658 = vmatpush1.bf16.msra.mxu0 %v612
        %659 = vmatprep.subr.bf16.mxu0 0
        %660 = vmatpush1.bf16.msra.mxu0 %v613
        %661 = vmatprep.subr.bf16.mxu0 0
        %662 = vmatpush1.bf16.msra.mxu0 %v614
        %663 = vmatprep.mubr.bf16.mxu0 %v494
        %664 = vmatmul.mubr.bf16.gmra.mrb[0].mxu0 %v488
        %v665 = vpop.f32.mrb[0].mxu0
        %v666 = vadd.f32 %v533, %v665
        %v667 = vpop.f32.mrb[0].mxu0
        %v668 = vpop.f32.mrb[0].mxu0
        %v669 = vadd.f32 %v533, %v668
        %v670 = vpop.f32.mrb[0].mxu0
        %671 = vdwg.mxu0
        %v672 = vmax.f32 %v666, 0.0
        %v673 = vmax.f32 %v669, 0.0
        %v674 = vpack.c.bf16 %v673, %v672
        %v675 = vld [vmem:[#allocation8] sm:$0xf]
        %v676 = vld [vmem:[#allocation8 + $0x4] sm:$0xf]
        %v677 = vld [vmem:[#allocation8 + $0x8] sm:$0xf]
        %v678 = vld [vmem:[#allocation8 + $0xc] sm:$0xf]
        %v679 = vld [vmem:[#allocation8 + $0x10] sm:$0xf]
        %v680 = vld [vmem:[#allocation8 + $0x14] sm:$0xf]
        %v681 = vld [vmem:[#allocation8 + $0x18] sm:$0xf]
        %v682 = vld [vmem:[#allocation8 + $0x1c] sm:$0xf]
        %v683 = vld [vmem:[#allocation8 + $0x20] sm:$0xf]
        %v684 = vld [vmem:[#allocation8 + $0x24] sm:$0xf]
        %v685 = vld [vmem:[#allocation8 + $0x28] sm:$0xf]
        %v686 = vld [vmem:[#allocation8 + $0x2c] sm:$0xf]
        %v687 = vld [vmem:[#allocation8 + $0x30] sm:$0xf]
        %v688 = vld [vmem:[#allocation8 + $0x34] sm:$0xf]
        %v689 = vld [vmem:[#allocation8 + $0x38] sm:$0xf]
        %v690 = vld [vmem:[#allocation8 + $0x3c] sm:$0xf]
        %v691 = vld [vmem:[%s5] sm:$0x1]
        %v693 = vlaneseq
        %v694 = vshrl.u32 %v693, 7
        %v695 = vsub.s32 0, %v694
        %v696 = vrot.slane %v691, %v695
        %v714 = vunpack.c.l.b16 %v675
        %v715 = vunpack.c.l.b16 %v676
        %v716 = vunpack.c.l.b16 %v677
        %v717 = vunpack.c.l.b16 %v678
        %v718 = vunpack.c.l.b16 %v679
        %v719 = vunpack.c.l.b16 %v680
        %v720 = vunpack.c.l.b16 %v681
        %v721 = vunpack.c.l.b16 %v682
        %v722 = vunpack.c.l.b16 %v683
        %v723 = vunpack.c.l.b16 %v684
        %v724 = vunpack.c.l.b16 %v685
        %v725 = vunpack.c.l.b16 %v686
        %v726 = vunpack.c.l.b16 %v687
        %v727 = vunpack.c.l.b16 %v688
        %v728 = vunpack.c.l.b16 %v689
        %v729 = vunpack.c.l.b16 %v690
        %v730 = vpack.c.b16 %v715, %v714
        %v731 = vpack.c.b16 %v717, %v716
        %v732 = vpack.c.b16 %v719, %v718
        %v733 = vpack.c.b16 %v721, %v720
        %v734 = vpack.c.b16 %v723, %v722
        %v735 = vpack.c.b16 %v725, %v724
        %v736 = vpack.c.b16 %v727, %v726
        %v737 = vpack.c.b16 %v729, %v728
        %746 = vmatprep.subr.bf16.mxu0 0
        %747 = vmatpush1.bf16.msra.mxu0 %v730
        %748 = vmatprep.subr.bf16.mxu0 0
        %749 = vmatpush1.bf16.msra.mxu0 %v731
        %750 = vmatprep.subr.bf16.mxu0 0
        %751 = vmatpush1.bf16.msra.mxu0 %v732
        %752 = vmatprep.subr.bf16.mxu0 0
        %753 = vmatpush1.bf16.msra.mxu0 %v733
        %754 = vmatprep.subr.bf16.mxu0 0
        %755 = vmatpush1.bf16.msra.mxu0 %v734
        %756 = vmatprep.subr.bf16.mxu0 0
        %757 = vmatpush1.bf16.msra.mxu0 %v735
        %758 = vmatprep.subr.bf16.mxu0 0
        %759 = vmatpush1.bf16.msra.mxu0 %v736
        %760 = vmatprep.subr.bf16.mxu0 0
        %761 = vmatpush1.bf16.msra.mxu0 %v737
        %762 = vmatprep.subr.bf16.mxu0 0
        %763 = vmatpush1.bf16.msra.mxu0 0
        %764 = vmatprep.subr.bf16.mxu0 0
        %765 = vmatpush1.bf16.msra.mxu0 0
        %766 = vmatprep.subr.bf16.mxu0 0
        %767 = vmatpush1.bf16.msra.mxu0 0
        %768 = vmatprep.subr.bf16.mxu0 0
        %769 = vmatpush1.bf16.msra.mxu0 0
        %770 = vmatprep.subr.bf16.mxu0 0
        %771 = vmatpush1.bf16.msra.mxu0 0
        %772 = vmatprep.subr.bf16.mxu0 0
        %773 = vmatpush1.bf16.msra.mxu0 0
        %774 = vmatprep.subr.bf16.mxu0 0
        %775 = vmatpush1.bf16.msra.mxu0 0
        %776 = vmatprep.subr.bf16.mxu0 0
        %777 = vmatpush1.bf16.msra.mxu0 0
        %778 = vmatprep.mubr.bf16.mxu0 0
        %779 = vmatmul.mubr.bf16.gmra.mrb[0].mxu0 %v674
        %v780 = vpop.f32.mrb[0].mxu0
        %v781 = vadd.f32 %v696, %v780
        %v782 = vpop.f32.mrb[0].mxu0
        %v783 = vpop.f32.mrb[0].mxu0
        %v784 = vadd.f32 %v696, %v783
        %v785 = vpop.f32.mrb[0].mxu0
        %786 = vdwg.mxu0
        %v787 = vmax.f32 %v781, 0.0
        %v788 = vmax.f32 %v784, 0.0
        %v789 = vpack.c.bf16 %v788, %v787
        %v790 = vld [vmem:[#allocation10] sm:$0xf]
        %v791 = vld [vmem:[#allocation10 + $0x4] sm:$0xf]
        %v792 = vld [vmem:[#allocation10 + $0x8] sm:$0xf]
        %v793 = vld [vmem:[#allocation10 + $0xc] sm:$0xf]
        %v794 = vld [vmem:[#allocation10 + $0x10] sm:$0xf]
        %v795 = vld [vmem:[#allocation10 + $0x14] sm:$0xf]
        %v796 = vld [vmem:[#allocation10 + $0x18] sm:$0xf]
        %v797 = vld [vmem:[#allocation10 + $0x1c] sm:$0xf]
        %v798 = vld [vmem:[#allocation10 + $0x20] sm:$0xf]
        %v799 = vld [vmem:[#allocation10 + $0x24] sm:$0xf]
        %v800 = vld [vmem:[#allocation10 + $0x28] sm:$0xf]
        %v801 = vld [vmem:[#allocation10 + $0x2c] sm:$0xf]
        %v802 = vld [vmem:[#allocation10 + $0x30] sm:$0xf]
        %v803 = vld [vmem:[#allocation10 + $0x34] sm:$0xf]
        %v804 = vld [vmem:[#allocation10 + $0x38] sm:$0xf]
        %v805 = vld [vmem:[#allocation10 + $0x3c] sm:$0xf]
        %v806 = vld [vmem:[%s7] sm:$0x1]
        %v808 = vlaneseq
        %v809 = vshrl.u32 %v808, 7
        %v810 = vsub.s32 0, %v809
        %v811 = vrot.slane %v806, %v810
        %v829 = vunpack.c.l.b16 %v790
        %v830 = vunpack.c.l.b16 %v791
        %v831 = vunpack.c.l.b16 %v792
        %v832 = vunpack.c.l.b16 %v793
        %v833 = vunpack.c.l.b16 %v794
        %v834 = vunpack.c.l.b16 %v795
        %v835 = vunpack.c.l.b16 %v796
        %v836 = vunpack.c.l.b16 %v797
        %v837 = vunpack.c.l.b16 %v798
        %v838 = vunpack.c.l.b16 %v799
        %v839 = vunpack.c.l.b16 %v800
        %v840 = vunpack.c.l.b16 %v801
        %v841 = vunpack.c.l.b16 %v802
        %v842 = vunpack.c.l.b16 %v803
        %v843 = vunpack.c.l.b16 %v804
        %v844 = vunpack.c.l.b16 %v805
        %v845 = vpack.c.b16 %v830, %v829
        %v846 = vpack.c.b16 %v832, %v831
        %v847 = vpack.c.b16 %v834, %v833
        %v848 = vpack.c.b16 %v836, %v835
        %v849 = vpack.c.b16 %v838, %v837
        %v850 = vpack.c.b16 %v840, %v839
        %v851 = vpack.c.b16 %v842, %v841
        %v852 = vpack.c.b16 %v844, %v843
        %861 = vmatprep.subr.bf16.mxu0 0
        %862 = vmatpush1.bf16.msra.mxu0 %v845
        %863 = vmatprep.subr.bf16.mxu0 0
        %864 = vmatpush1.bf16.msra.mxu0 %v846
        %865 = vmatprep.subr.bf16.mxu0 0
        %866 = vmatpush1.bf16.msra.mxu0 %v847
        %867 = vmatprep.subr.bf16.mxu0 0
        %868 = vmatpush1.bf16.msra.mxu0 %v848
        %869 = vmatprep.subr.bf16.mxu0 0
        %870 = vmatpush1.bf16.msra.mxu0 %v849
        %871 = vmatprep.subr.bf16.mxu0 0
        %872 = vmatpush1.bf16.msra.mxu0 %v850
        %873 = vmatprep.subr.bf16.mxu0 0
        %874 = vmatpush1.bf16.msra.mxu0 %v851
        %875 = vmatprep.subr.bf16.mxu0 0
        %876 = vmatpush1.bf16.msra.mxu0 %v852
        %877 = vmatprep.subr.bf16.mxu0 0
        %878 = vmatpush1.bf16.msra.mxu0 0
        %879 = vmatprep.subr.bf16.mxu0 0
        %880 = vmatpush1.bf16.msra.mxu0 0
        %881 = vmatprep.subr.bf16.mxu0 0
        %882 = vmatpush1.bf16.msra.mxu0 0
        %883 = vmatprep.subr.bf16.mxu0 0
        %884 = vmatpush1.bf16.msra.mxu0 0
        %885 = vmatprep.subr.bf16.mxu0 0
        %886 = vmatpush1.bf16.msra.mxu0 0
        %887 = vmatprep.subr.bf16.mxu0 0
        %888 = vmatpush1.bf16.msra.mxu0 0
        %889 = vmatprep.subr.bf16.mxu0 0
        %890 = vmatpush1.bf16.msra.mxu0 0
        %891 = vmatprep.subr.bf16.mxu0 0
        %892 = vmatpush1.bf16.msra.mxu0 0
        %893 = vmatprep.mubr.bf16.mxu0 0
        %894 = vmatmul.mubr.bf16.gmra.mrb[0].mxu0 %v789
        %v895 = vpop.f32.mrb[0].mxu0
        %v896 = vadd.f32 %v811, %v895
        %v897 = vpop.f32.mrb[0].mxu0
        %v898 = vpop.f32.mrb[0].mxu0
        %v899 = vadd.f32 %v811, %v898
        %v900 = vpop.f32.mrb[0].mxu0
        %901 = vdwg.mxu0
        %v902 = vadd.f32 %v896, %v672
        %v903 = vadd.f32 %v899, %v673
        %v904 = vmax.f32 %v902, 0.0
        %v905 = vmax.f32 %v903, 0.0
        %v906 = vpack.c.bf16 %v905, %v904
        %s907 = scalar_lea.vmem [#allocation8], 64
        %v908 = vld [vmem:[%s907] sm:$0xf]
        %v909 = vld [vmem:[%s907 + $0x4] sm:$0xf]
        %v910 = vld [vmem:[%s907 + $0x8] sm:$0xf]
        %v911 = vld [vmem:[%s907 + $0xc] sm:$0xf]
        %v912 = vld [vmem:[%s907 + $0x10] sm:$0xf]
        %v913 = vld [vmem:[%s907 + $0x14] sm:$0xf]
        %v914 = vld [vmem:[%s907 + $0x18] sm:$0xf]
        %v915 = vld [vmem:[%s907 + $0x1c] sm:$0xf]
        %v916 = vld [vmem:[%s907 + $0x20] sm:$0xf]
        %v917 = vld [vmem:[%s907 + $0x24] sm:$0xf]
        %v918 = vld [vmem:[%s907 + $0x28] sm:$0xf]
        %v919 = vld [vmem:[%s907 + $0x2c] sm:$0xf]
        %v920 = vld [vmem:[%s907 + $0x30] sm:$0xf]
        %v921 = vld [vmem:[%s907 + $0x34] sm:$0xf]
        %v922 = vld [vmem:[%s907 + $0x38] sm:$0xf]
        %v923 = vld [vmem:[%s907 + $0x3c] sm:$0xf]
        %s924 = scalar_lea.vmem %s5, 1
        %v925 = vld [vmem:[%s924] sm:$0x1]
        %v927 = vlaneseq
        %v928 = vshrl.u32 %v927, 7
        %v929 = vsub.s32 0, %v928
        %v930 = vrot.slane %v925, %v929
        %v948 = vunpack.c.l.b16 %v908
        %v949 = vunpack.c.l.b16 %v909
        %v950 = vunpack.c.l.b16 %v910
        %v951 = vunpack.c.l.b16 %v911
        %v952 = vunpack.c.l.b16 %v912
        %v953 = vunpack.c.l.b16 %v913
        %v954 = vunpack.c.l.b16 %v914
        %v955 = vunpack.c.l.b16 %v915
        %v956 = vunpack.c.l.b16 %v916
        %v957 = vunpack.c.l.b16 %v917
        %v958 = vunpack.c.l.b16 %v918
        %v959 = vunpack.c.l.b16 %v919
        %v960 = vunpack.c.l.b16 %v920
        %v961 = vunpack.c.l.b16 %v921
        %v962 = vunpack.c.l.b16 %v922
        %v963 = vunpack.c.l.b16 %v923
        %v964 = vpack.c.b16 %v949, %v948
        %v965 = vpack.c.b16 %v951, %v950
        %v966 = vpack.c.b16 %v953, %v952
        %v967 = vpack.c.b16 %v955, %v954
        %v968 = vpack.c.b16 %v957, %v956
        %v969 = vpack.c.b16 %v959, %v958
        %v970 = vpack.c.b16 %v961, %v960
        %v971 = vpack.c.b16 %v963, %v962
        %980 = vmatprep.subr.bf16.mxu0 0
        %981 = vmatpush1.bf16.msra.mxu0 %v964
        %982 = vmatprep.subr.bf16.mxu0 0
        %983 = vmatpush1.bf16.msra.mxu0 %v965
        %984 = vmatprep.subr.bf16.mxu0 0
        %985 = vmatpush1.bf16.msra.mxu0 %v966
        %986 = vmatprep.subr.bf16.mxu0 0
        %987 = vmatpush1.bf16.msra.mxu0 %v967
        %988 = vmatprep.subr.bf16.mxu0 0
        %989 = vmatpush1.bf16.msra.mxu0 %v968
        %990 = vmatprep.subr.bf16.mxu0 0
        %991 = vmatpush1.bf16.msra.mxu0 %v969
        %992 = vmatprep.subr.bf16.mxu0 0
        %993 = vmatpush1.bf16.msra.mxu0 %v970
        %994 = vmatprep.subr.bf16.mxu0 0
        %995 = vmatpush1.bf16.msra.mxu0 %v971
        %996 = vmatprep.subr.bf16.mxu0 0
        %997 = vmatpush1.bf16.msra.mxu0 0
        %998 = vmatprep.subr.bf16.mxu0 0
        %999 = vmatpush1.bf16.msra.mxu0 0
        %1000 = vmatprep.subr.bf16.mxu0 0
        %1001 = vmatpush1.bf16.msra.mxu0 0
        %1002 = vmatprep.subr.bf16.mxu0 0
        %1003 = vmatpush1.bf16.msra.mxu0 0
        %1004 = vmatprep.subr.bf16.mxu0 0
        %1005 = vmatpush1.bf16.msra.mxu0 0
        %1006 = vmatprep.subr.bf16.mxu0 0
        %1007 = vmatpush1.bf16.msra.mxu0 0
        %1008 = vmatprep.subr.bf16.mxu0 0
        %1009 = vmatpush1.bf16.msra.mxu0 0
        %1010 = vmatprep.subr.bf16.mxu0 0
        %1011 = vmatpush1.bf16.msra.mxu0 0
        %1012 = vmatprep.mubr.bf16.mxu0 0
        %1013 = vmatmul.mubr.bf16.gmra.mrb[0].mxu0 %v906
        %v1014 = vpop.f32.mrb[0].mxu0
        %v1015 = vadd.f32 %v930, %v1014
        %v1016 = vpop.f32.mrb[0].mxu0
        %v1017 = vpop.f32.mrb[0].mxu0
        %v1018 = vadd.f32 %v930, %v1017
        %v1019 = vpop.f32.mrb[0].mxu0
        %1020 = vdwg.mxu0
        %v1021 = vmax.f32 %v1015, 0.0
        %v1022 = vmax.f32 %v1018, 0.0
        %v1023 = vpack.c.bf16 %v1022, %v1021
        %s1024 = scalar_lea.vmem [#allocation10], 64
        %v1025 = vld [vmem:[%s1024] sm:$0xf]
        %v1026 = vld [vmem:[%s1024 + $0x4] sm:$0xf]
        %v1027 = vld [vmem:[%s1024 + $0x8] sm:$0xf]
        %v1028 = vld [vmem:[%s1024 + $0xc] sm:$0xf]
        %v1029 = vld [vmem:[%s1024 + $0x10] sm:$0xf]
        %v1030 = vld [vmem:[%s1024 + $0x14] sm:$0xf]
        %v1031 = vld [vmem:[%s1024 + $0x18] sm:$0xf]
        %v1032 = vld [vmem:[%s1024 + $0x1c] sm:$0xf]
        %v1033 = vld [vmem:[%s1024 + $0x20] sm:$0xf]
        %v1034 = vld [vmem:[%s1024 + $0x24] sm:$0xf]
        %v1035 = vld [vmem:[%s1024 + $0x28] sm:$0xf]
        %v1036 = vld [vmem:[%s1024 + $0x2c] sm:$0xf]
        %v1037 = vld [vmem:[%s1024 + $0x30] sm:$0xf]
        %v1038 = vld [vmem:[%s1024 + $0x34] sm:$0xf]
        %v1039 = vld [vmem:[%s1024 + $0x38] sm:$0xf]
        %v1040 = vld [vmem:[%s1024 + $0x3c] sm:$0xf]
        %s1041 = scalar_lea.vmem %s7, 1
        %v1042 = vld [vmem:[%s1041] sm:$0x1]
        %v1044 = vlaneseq
        %v1045 = vshrl.u32 %v1044, 7
        %v1046 = vsub.s32 0, %v1045
        %v1047 = vrot.slane %v1042, %v1046
        %v1065 = vunpack.c.l.b16 %v1025
        %v1066 = vunpack.c.l.b16 %v1026
        %v1067 = vunpack.c.l.b16 %v1027
        %v1068 = vunpack.c.l.b16 %v1028
        %v1069 = vunpack.c.l.b16 %v1029
        %v1070 = vunpack.c.l.b16 %v1030
        %v1071 = vunpack.c.l.b16 %v1031
        %v1072 = vunpack.c.l.b16 %v1032
        %v1073 = vunpack.c.l.b16 %v1033
        %v1074 = vunpack.c.l.b16 %v1034
        %v1075 = vunpack.c.l.b16 %v1035
        %v1076 = vunpack.c.l.b16 %v1036
        %v1077 = vunpack.c.l.b16 %v1037
        %v1078 = vunpack.c.l.b16 %v1038
        %v1079 = vunpack.c.l.b16 %v1039
        %v1080 = vunpack.c.l.b16 %v1040
        %v1081 = vpack.c.b16 %v1066, %v1065
        %v1082 = vpack.c.b16 %v1068, %v1067
        %v1083 = vpack.c.b16 %v1070, %v1069
        %v1084 = vpack.c.b16 %v1072, %v1071
        %v1085 = vpack.c.b16 %v1074, %v1073
        %v1086 = vpack.c.b16 %v1076, %v1075
        %v1087 = vpack.c.b16 %v1078, %v1077
        %v1088 = vpack.c.b16 %v1080, %v1079
        %1097 = vmatprep.subr.bf16.mxu0 0
        %1098 = vmatpush1.bf16.msra.mxu0 %v1081
        %1099 = vmatprep.subr.bf16.mxu0 0
        %1100 = vmatpush1.bf16.msra.mxu0 %v1082
        %1101 = vmatprep.subr.bf16.mxu0 0
        %1102 = vmatpush1.bf16.msra.mxu0 %v1083
        %1103 = vmatprep.subr.bf16.mxu0 0
        %1104 = vmatpush1.bf16.msra.mxu0 %v1084
        %1105 = vmatprep.subr.bf16.mxu0 0
        %1106 = vmatpush1.bf16.msra.mxu0 %v1085
        %1107 = vmatprep.subr.bf16.mxu0 0
        %1108 = vmatpush1.bf16.msra.mxu0 %v1086
        %1109 = vmatprep.subr.bf16.mxu0 0
        %1110 = vmatpush1.bf16.msra.mxu0 %v1087
        %1111 = vmatprep.subr.bf16.mxu0 0
        %1112 = vmatpush1.bf16.msra.mxu0 %v1088
        %1113 = vmatprep.subr.bf16.mxu0 0
        %1114 = vmatpush1.bf16.msra.mxu0 0
        %1115 = vmatprep.subr.bf16.mxu0 0
        %1116 = vmatpush1.bf16.msra.mxu0 0
        %1117 = vmatprep.subr.bf16.mxu0 0
        %1118 = vmatpush1.bf16.msra.mxu0 0
        %1119 = vmatprep.subr.bf16.mxu0 0
        %1120 = vmatpush1.bf16.msra.mxu0 0
        %1121 = vmatprep.subr.bf16.mxu0 0
        %1122 = vmatpush1.bf16.msra.mxu0 0
        %1123 = vmatprep.subr.bf16.mxu0 0
        %1124 = vmatpush1.bf16.msra.mxu0 0
        %1125 = vmatprep.subr.bf16.mxu0 0
        %1126 = vmatpush1.bf16.msra.mxu0 0
        %1127 = vmatprep.subr.bf16.mxu0 0
        %1128 = vmatpush1.bf16.msra.mxu0 0
        %1129 = vmatprep.mubr.bf16.mxu0 0
        %1130 = vmatmul.mubr.bf16.gmra.mrb[0].mxu0 %v1023
        %v1131 = vpop.f32.mrb[0].mxu0
        %v1132 = vadd.f32 %v1047, %v1131
        %v1133 = vpop.f32.mrb[0].mxu0
        %v1134 = vpop.f32.mrb[0].mxu0
        %v1135 = vadd.f32 %v1047, %v1134
        %v1136 = vpop.f32.mrb[0].mxu0
        %1137 = vdwg.mxu0
        %v1138 = vadd.f32 %v1132, %v904
        %v1139 = vadd.f32 %v1135, %v905
        %v1140 = vmax.f32 %v1138, 0.0
        %v1141 = vmax.f32 %v1139, 0.0
        %v1142 = vpack.c.bf16 %v1141, %v1140
        %v1143 = vld [vmem:[#allocation11] sm:$0xf]
        %v1144 = vld [vmem:[#allocation11 + $0x4] sm:$0xf]
        %v1145 = vld [vmem:[#allocation11 + $0x8] sm:$0xf]
        %v1146 = vld [vmem:[#allocation11 + $0xc] sm:$0xf]
        %v1147 = vld [vmem:[#allocation11 + $0x10] sm:$0xf]
        %v1148 = vld [vmem:[#allocation11 + $0x14] sm:$0xf]
        %v1149 = vld [vmem:[#allocation11 + $0x18] sm:$0xf]
        %v1150 = vld [vmem:[#allocation11 + $0x1c] sm:$0xf]
        %v1151 = vld [vmem:[#allocation11 + $0x20] sm:$0xf]
        %v1152 = vld [vmem:[#allocation11 + $0x24] sm:$0xf]
        %v1153 = vld [vmem:[#allocation11 + $0x28] sm:$0xf]
        %v1154 = vld [vmem:[#allocation11 + $0x2c] sm:$0xf]
        %v1155 = vld [vmem:[#allocation11 + $0x30] sm:$0xf]
        %v1156 = vld [vmem:[#allocation11 + $0x34] sm:$0xf]
        %v1157 = vld [vmem:[#allocation11 + $0x38] sm:$0xf]
        %v1158 = vld [vmem:[#allocation11 + $0x3c] sm:$0xf]
        %v1159 = vld [vmem:[%s9] sm:$0x1]
        %v1161 = vlaneseq
        %v1162 = vshrl.u32 %v1161, 7
        %v1163 = vsub.s32 0, %v1162
        %v1164 = vrot.slane %v1159, %v1163
        %v1182 = vunpack.c.l.b16 %v1143
        %v1183 = vunpack.c.l.b16 %v1144
        %v1184 = vunpack.c.l.b16 %v1145
        %v1185 = vunpack.c.l.b16 %v1146
        %v1186 = vunpack.c.l.b16 %v1147
        %v1187 = vunpack.c.l.b16 %v1148
        %v1188 = vunpack.c.l.b16 %v1149
        %v1189 = vunpack.c.l.b16 %v1150
        %v1190 = vunpack.c.l.b16 %v1151
        %v1191 = vunpack.c.l.b16 %v1152
        %v1192 = vunpack.c.l.b16 %v1153
        %v1193 = vunpack.c.l.b16 %v1154
        %v1194 = vunpack.c.l.b16 %v1155
        %v1195 = vunpack.c.l.b16 %v1156
        %v1196 = vunpack.c.l.b16 %v1157
        %v1197 = vunpack.c.l.b16 %v1158
        %v1198 = vpack.c.b16 %v1183, %v1182
        %v1199 = vpack.c.b16 %v1185, %v1184
        %v1200 = vpack.c.b16 %v1187, %v1186
        %v1201 = vpack.c.b16 %v1189, %v1188
        %v1202 = vpack.c.b16 %v1191, %v1190
        %v1203 = vpack.c.b16 %v1193, %v1192
        %v1204 = vpack.c.b16 %v1195, %v1194
        %v1205 = vpack.c.b16 %v1197, %v1196
        %1214 = vmatprep.subr.bf16.mxu0 0
        %1215 = vmatpush1.bf16.msra.mxu0 %v1198
        %1216 = vmatprep.subr.bf16.mxu0 0
        %1217 = vmatpush1.bf16.msra.mxu0 %v1199
        %1218 = vmatprep.subr.bf16.mxu0 0
        %1219 = vmatpush1.bf16.msra.mxu0 %v1200
        %1220 = vmatprep.subr.bf16.mxu0 0
        %1221 = vmatpush1.bf16.msra.mxu0 %v1201
        %1222 = vmatprep.subr.bf16.mxu0 0
        %1223 = vmatpush1.bf16.msra.mxu0 %v1202
        %1224 = vmatprep.subr.bf16.mxu0 0
        %1225 = vmatpush1.bf16.msra.mxu0 %v1203
        %1226 = vmatprep.subr.bf16.mxu0 0
        %1227 = vmatpush1.bf16.msra.mxu0 %v1204
        %1228 = vmatprep.subr.bf16.mxu0 0
        %1229 = vmatpush1.bf16.msra.mxu0 %v1205
        %1230 = vmatprep.subr.bf16.mxu0 0
        %1231 = vmatpush1.bf16.msra.mxu0 0
        %1232 = vmatprep.subr.bf16.mxu0 0
        %1233 = vmatpush1.bf16.msra.mxu0 0
        %1234 = vmatprep.subr.bf16.mxu0 0
        %1235 = vmatpush1.bf16.msra.mxu0 0
        %1236 = vmatprep.subr.bf16.mxu0 0
        %1237 = vmatpush1.bf16.msra.mxu0 0
        %1238 = vmatprep.subr.bf16.mxu0 0
        %1239 = vmatpush1.bf16.msra.mxu0 0
        %1240 = vmatprep.subr.bf16.mxu0 0
        %1241 = vmatpush1.bf16.msra.mxu0 0
        %1242 = vmatprep.subr.bf16.mxu0 0
        %1243 = vmatpush1.bf16.msra.mxu0 0
        %1244 = vmatprep.subr.bf16.mxu0 0
        %1245 = vmatpush1.bf16.msra.mxu0 0
        %1246 = vmatprep.mubr.bf16.mxu0 0
        %1247 = vmatmul.mubr.bf16.gmra.mrb[0].mxu0 %v1142
        %v1248 = vpop.f32.mrb[0].mxu0
        %v1249 = vadd.f32 %v1164, %v1248
        %v1250 = vpop.f32.mrb[0].mxu0
        %v1251 = vpop.f32.mrb[0].mxu0
        %v1252 = vadd.f32 %v1164, %v1251
        %v1253 = vpop.f32.mrb[0].mxu0
        %1254 = vdwg.mxu0
        %v1255 = vmax.f32 %v1249, 0.0
        %v1256 = vmax.f32 %v1252, 0.0
        %1257 = vst [vmem:[%s475] sm:$0xff] %v1255
        %1258 = vst [vmem:[%s475 + $0x8] sm:$0xff] %v1256
        %s1259 = sand.u32 %s260, 1
        %s1260 = scalar_lea.sflag [#allocation4], %s1259
        %s1261 = sand.u32 %s260, 1
        %s1262 = smul.addr %s1261, 16
        %s1263 = scalar_lea.vmem [#allocation13], %s1262
        // Predicated region
        $region85: #{tpu_custom_call.1} parent=59 // pred_check
          %p1264 = pneg %p270
        $region86: #{tpu_custom_call.1} parent=59 // pred_check_branch
          %1266 = sbr.rel (%p1264) target = $region88
        $region87: #{tpu_custom_call.1} parent=59 // pred_region
          %s1267 = smul.u32 2, %s32
          %s1269 = ssub.s32 256, 256
          %1270 = vsyncadd %s1260, %s1269
          %s1271 = smul.addr %s1267, 128
          %s1272 = scalar_lea.hbm %s10, %s1271
          %s1273 = sshll.u32 %s1263, 4
          %s1274 = int_to_ptr.vmem [resolvable:$true] %s1273
          %1279 = dma.vmem_to_hbm [thread:$0]  %s1274, 256, %s1272, %s1260, 128, 128, 8
        $region88: #{tpu_custom_call.1} parent=59 // pred_fallthru
          _
      $region60: #{tpu_custom_call.1} parent=5 // pred_fallthru
        _
      %p1280 = scmp.le.s32.totalorder 2, %s27
      // Predicated region
      $region89: #{tpu_custom_call.1} parent=5 // pred_check
        %p1281 = pneg %p1280
      $region90: #{tpu_custom_call.1} parent=5 // pred_check_branch
        %1283 = sbr.rel (%p1281) target = $region92
      $region91: #{tpu_custom_call.1} parent=5 // pred_region
        %s1284 = ssub.s32 %s27, 2
        // Predicated region
        $region93: #{tpu_custom_call.1} parent=91 // pred_check
          %p1285 = pneg %p276
        $region94: #{tpu_custom_call.1} parent=91 // pred_check_branch
          %1287 = sbr.rel (%p1285) target = $region96
        $region95: #{tpu_custom_call.1} parent=91 // pred_region
          %s1288 = sand.u32 %s261, 1
          %s1289 = scalar_lea.sflag [#allocation4], %s1288
          %s1290 = sand.u32 %s261, 1
          %s1291 = smul.addr %s1290, 16
          %s1292 = scalar_lea.vmem [#allocation13], %s1291
          %1293 = dma.done %s1289, 256
        $region96: #{tpu_custom_call.1} parent=91 // pred_fallthru
          _
      $region92: #{tpu_custom_call.1} parent=5 // pred_fallthru
        _
    $region6: #{tpu_custom_call.1} parent=1 // loop_footer
      %s31 = sadd.s32 1, %s27
    $region7: #{tpu_custom_call.1} parent=1 // loop_footer_branch
      %26 = sbr.rel target = $region3
    $region8: #{tpu_custom_call.1} parent=1 // loop_exit
      _
    %1294 = vsyncpa [#allocation3], 1
    %s1295 = scalar_lea.sflag [#allocation3], 1
    %1296 = vsyncpa %s1295, 1
    %1297 = vsyncpa [#allocation6], 1
    %s1298 = scalar_lea.sflag [#allocation6], 1
    %1299 = vsyncpa %s1298, 1
    %1300 = vsyncpa [#allocation9], 1
    %1301 = vsyncpa [#allocation12], 1
    %1302 = vsyncpa [#allocation4], 1
    %s1303 = scalar_lea.sflag [#allocation4], 1
    %1304 = vsyncpa %s1303, 1

</llo_original>
